<compile_context>
chip_gen: v7x
topology: tpu7x:2x2x1
jax: 0.10.0
libtpu: 0.0.40
codegen_flags: <defaults>
</compile_context>

<pallas_src>
import functools

import jax
import jax.numpy as jnp
from jax.experimental import pallas as pl
from jax.experimental.pallas import tpu as pltpu


# ---------------------------------------------------------------------------
# Small helpers
# ---------------------------------------------------------------------------
def _round_up(x, m):
    return (x + m - 1) // m * m


def _pad2d(a, rows, cols, dtype):
    out = jnp.zeros((rows, cols), dtype)
    return out.at[: a.shape[0], : a.shape[1]].set(a.astype(dtype))


def _probe_kernel(x_ref, o_ref):
    o_ref[...] = x_ref[...] + 1.0


@functools.lru_cache(maxsize=None)
def _resident_buffer_count():
    """1 if single-buffered resident BlockSpecs (pipeline_mode=pl.Buffered(1))
    compile and run on this backend, else None (use default pipelining)."""
    try:
        with jax.ensure_compile_time_eval():
            spec = pl.BlockSpec((8, 128), lambda i: (0, 0),
                                pipeline_mode=pl.Buffered(1))
            out = pl.pallas_call(
                _probe_kernel,
                out_shape=jax.ShapeDtypeStruct((8, 128), jnp.float32),
                grid_spec=pltpu.PrefetchScalarGridSpec(
                    num_scalar_prefetch=0,
                    grid=(1,),
                    in_specs=[spec],
                    out_specs=pl.BlockSpec((8, 128), lambda i: (0, 0)),
                ),
            )(jnp.zeros((8, 128), jnp.float32))
            jax.block_until_ready(out)
        return 1
    except Exception:  # pragma: no cover - fall back to default double-buffering
        return None


def _block_spec(block_shape, index_map, *, buffers=None):
    """BlockSpec; optionally single-buffered for operands resident across the grid."""
    if buffers is not None:
        try:
            return pl.BlockSpec(block_shape, index_map,
                                pipeline_mode=pl.Buffered(buffers))
        except (TypeError, AttributeError):
            pass
    return pl.BlockSpec(block_shape, index_map)


def _compiler_params(dim_semantics, vmem_bytes_needed):
    # Raise the scoped-VMEM limit explicitly (v5e defaults to 16 MiB) while
    # staying well under v7x's 64 MiB of physical VMEM.
    limit = int(min(48 * 1024 * 1024,
                    max(32 * 1024 * 1024, 2 * vmem_bytes_needed)))
    return pltpu.CompilerParams(dimension_semantics=dim_semantics,
                                vmem_limit_bytes=limit)


def _choose_tiling(n, *, max_block_m=512, max_block_k=2048):
    """Pick (n_pad, block_m, block_k) for the (n x n) weighted adjacency.

    block_k (reduction / src axis) is as long as possible -> long sequential
    adjacency DMAs and few grid steps; block_m (dst axis) stays modest so the
    f32 accumulator / output tile is small, keeping >= 2 dst blocks (even count
    preferred) so both v7x TensorCores are fed by the "parallel" axis.
    """
    n128 = _round_up(max(n, 128), 128)
    if n128 <= max_block_k:
        block_k = n128
        n_pad = n128
    else:
        block_k = max_block_k
        n_pad = _round_up(n128, block_k)
    candidates = [m for m in range(128, max_block_m + 1, 128) if n_pad % m == 0]
    block_m = 128
    for m in candidates:                       # largest tile with >= 2 dst blocks
        if n_pad // m >= 2:
            block_m = m
    even = [m for m in candidates if n_pad // m >= 2 and (n_pad // m) % 2 == 0]
    if even:                                   # prefer an even dst-block count
        block_m = max(even)
    return n_pad, block_m, block_k


# ---------------------------------------------------------------------------
# Kernels
# ---------------------------------------------------------------------------
def _gcn_aggregate_kernel(*refs, block_k, x_resident, fuse_linear, apply_act,
                          compute_dtype):
    """One (dst_block, src_block) grid step of a GCN layer.

    Fused variant (fuse_linear=True, used when Fout >= Fin):
        acc += A_q[i, k] @ x[k]                      (f32 accumulate over src)
        finalize: out[i] = act(acc @ W' + b)
    Aggregate-only variant (fuse_linear=False, features already transformed to
    z = x @ W' by _feature_transform_kernel; used when Fout < Fin):
        acc += A_q[i, k] @ z[k]
        finalize: out[i] = act(acc + b)

    A_q is the int8-quantized adjacency; its dequantization scale is folded
    into W' (resp. z), so the kernel only casts int8 -> bf16 inside VMEM.
    """
    if fuse_linear:
        adj_ref, x_ref, w_ref, b_ref, o_ref, acc_ref = refs
    else:
        adj_ref, x_ref, b_ref, o_ref, acc_ref = refs
        w_ref = None

    k = pl.program_id(1)

    @pl.when(k == 0)
    def _init():
        acc_ref[...] = jnp.zeros_like(acc_ref)

    if x_resident:
        # Features are fully VMEM-resident; slice the current src rows in-kernel.
        start = pl.multiple_of(k * block_k, block_k)
        x_tile = x_ref[pl.ds(start, block_k), :]
    else:
        x_tile = x_ref[...]

    # Dequantize the int8 adjacency tile in VMEM (HBM traffic stays int8);
    # the MXU runs bf16 with f32 accumulation.
    adj_tile = adj_ref[...].astype(compute_dtype)
    acc_ref[...] += jnp.dot(adj_tile, x_tile,
                            preferred_element_type=jnp.float32)

    @pl.when(k == pl.num_programs(1) - 1)
    def _finalize():
        acc = acc_ref[...]
        if fuse_linear:
            # NOTE: the f32 accumulator is cast to bf16 for the MXU here, which
            # is consistent with the bf16 compute path (5e-2 tol, not f32 parity).
            h = jnp.dot(acc.astype(compute_dtype), w_ref[...],
                        preferred_element_type=jnp.float32)
        else:
            h = acc
        h = h + b_ref[...]
        if apply_act:
            h = jnp.maximum(h, 0.0)
        o_ref[...] = h.astype(o_ref.dtype)


def _feature_transform_kernel(x_ref, w_ref, z_ref):
    """z = x @ W' (row-blocked). Used when Fout < Fin so that the N^2-scaling
    aggregation can run at the narrower output width (matmul associativity)."""
    z_ref[...] = jnp.dot(x_ref[...], w_ref[...],
                         preferred_element_type=jnp.float32).astype(z_ref.dtype)


# ---------------------------------------------------------------------------
# pallas_call wrappers (operate on already-padded arrays)
# ---------------------------------------------------------------------------
def feature_transform(x_p, w_p, *, block_m, compute_dtype):
    n_pad, fin_pad = x_p.shape
    fout_pad = w_p.shape[1]
    assert n_pad % block_m == 0
    itemsize = jnp.dtype(compute_dtype).itemsize
    vmem_needed = (2 * block_m * fin_pad * itemsize
                   + fin_pad * fout_pad * itemsize
                   + 2 * block_m * fout_pad * itemsize)
    cost = pl.CostEstimate(
        flops=2 * n_pad * fin_pad * fout_pad,
        transcendentals=0,
        bytes_accessed=(x_p.size * x_p.dtype.itemsize
                        + w_p.size * w_p.dtype.itemsize
                        + n_pad * fout_pad * itemsize))
    return pl.pallas_call(
        _feature_transform_kernel,
        out_shape=jax.ShapeDtypeStruct((n_pad, fout_pad), compute_dtype),
        grid_spec=pltpu.PrefetchScalarGridSpec(
            num_scalar_prefetch=0,
            grid=(n_pad // block_m,),
            in_specs=[
                pl.BlockSpec((block_m, fin_pad), lambda i: (i, 0)),
                _block_spec((fin_pad, fout_pad), lambda i: (0, 0),
                            buffers=_resident_buffer_count()),
            ],
            out_specs=pl.BlockSpec((block_m, fout_pad), lambda i: (i, 0)),
        ),
        compiler_params=_compiler_params(("parallel",), vmem_needed),
        cost_estimate=cost,
    )(x_p, w_p)


def gcn_aggregate(adj_q, x_p, b_p, w_p=None, *, block_m, block_k, x_resident,
                  apply_act, compute_dtype):
    """act(A_q @ x [@ W'] + b) on padded arrays (W' fused only if provided)."""
    n_pad = adj_q.shape[0]
    feat_in = x_p.shape[1]
    fuse_linear = w_p is not None
    fout_pad = w_p.shape[1] if fuse_linear else feat_in
    assert n_pad % block_m == 0 and n_pad % block_k == 0

    kernel = functools.partial(
        _gcn_aggregate_kernel, block_k=block_k, x_resident=x_resident,
        fuse_linear=fuse_linear, apply_act=apply_act,
        compute_dtype=compute_dtype)

    resident = _resident_buffer_count()
    in_specs = [pl.BlockSpec((block_m, block_k), lambda i, k: (i, k))]
    operands = [adj_q]
    if x_resident:
        in_specs.append(_block_spec((n_pad, feat_in), lambda i, k: (0, 0),
                                    buffers=resident))
    else:
        in_specs.append(pl.BlockSpec((block_k, feat_in), lambda i, k: (k, 0)))
    operands.append(x_p)
    if fuse_linear:
        in_specs.append(_block_spec((feat_in, fout_pad), lambda i, k: (0, 0),
                                    buffers=resident))
        operands.append(w_p)
    in_specs.append(_block_spec((1, fout_pad), lambda i, k: (0, 0),
                                buffers=resident))
    operands.append(b_p)

    itemsize = jnp.dtype(compute_dtype).itemsize
    adj_bytes = adj_q.size * adj_q.dtype.itemsize
    x_bytes = x_p.size * x_p.dtype.itemsize
    w_bytes = w_p.size * w_p.dtype.itemsize if fuse_linear else 0
    out_bytes = n_pad * fout_pad * itemsize
    flops = 2 * n_pad * n_pad * feat_in
    if fuse_linear:
        flops += 2 * n_pad * feat_in * fout_pad
    cost = pl.CostEstimate(
        flops=flops, transcendentals=0,
        bytes_accessed=adj_bytes + w_bytes + out_bytes
        + (x_bytes if x_resident else x_bytes * (n_pad // block_m)))

    vmem_needed = (2 * block_m * block_k * adj_q.dtype.itemsize
                   + (x_bytes if x_resident else 2 * block_k * feat_in * itemsize)
                   + 2 * block_m * fout_pad * itemsize
                   + block_m * feat_in * 4
                   + 2 * w_bytes + 2 * fout_pad * 4)

    return pl.pallas_call(
        kernel,
        out_shape=jax.ShapeDtypeStruct((n_pad, fout_pad), compute_dtype),
        grid_spec=pltpu.PrefetchScalarGridSpec(
            num_scalar_prefetch=0,
            grid=(n_pad // block_m, n_pad // block_k),
            in_specs=in_specs,
            out_specs=pl.BlockSpec((block_m, fout_pad), lambda i, k: (i, 0)),
            scratch_shapes=[pltpu.VMEM((block_m, feat_in), jnp.float32)],
        ),
        compiler_params=_compiler_params(("parallel", "arbitrary"), vmem_needed),
        cost_estimate=cost,
    )(*operands)


# ---------------------------------------------------------------------------
# Full forward pass (stack of GCNLayers)
# ---------------------------------------------------------------------------
def gcn_forward(adj_w, features, params, *, compute_dtype=jnp.bfloat16,
                quantize_adj=True, x_resident_bytes=12 * 1024 * 1024):
    """h <- activation(A_w @ h @ W + b) per layer (ReLU on hidden layers,
    linear output layer). params = [(W, b), ...], W stored as (in, out)."""
    n = adj_w.shape[0]
    n_pad, block_m, block_k = _choose_tiling(n)

    # Pad once. Padded src columns of adj are zero, so garbage in padded rows
    # of h never reaches real nodes; the logical output is sliced at the end.
    adj_f32 = jnp.zeros((n_pad, n_pad), jnp.float32).at[:n, :n].set(
        adj_w.astype(jnp.float32))
    if quantize_adj:
        # int8 adjacency with a single global scale: halves the dominant HBM
        # stream on every TPU generation (dequantized to bf16 in VMEM, so no
        # int8/fp8 MXU path is required and it also works on v7x).
        max_abs = jnp.maximum(jnp.max(jnp.abs(adj_f32)), 1e-12)
        adj_scale = max_abs / 127.0
        adj_p = jnp.clip(jnp.round(adj_f32 / adj_scale),
                         -127.0, 127.0).astype(jnp.int8)
    else:
        adj_scale = jnp.float32(1.0)
        adj_p = adj_f32.astype(compute_dtype)

    h = _pad2d(features, n_pad, _round_up(features.shape[1], 128), compute_dtype)

    n_layers = len(params)
    for li, (w, b) in enumerate(params):
        fin_l, fout_l = w.shape
        fin_lp = _round_up(fin_l, 128)
        fout_lp = _round_up(fout_l, 128)
        apply_act = li < n_layers - 1  # ReLU on hidden layers, linear output

        # Fold the adjacency dequantization scale into the (tiny) weight so the
        # kernels never need it as a runtime scalar.
        w_p = _pad2d(w.astype(jnp.float32) * adj_scale, fin_lp, fout_lp,
                     compute_dtype)
        b_p = _pad2d(b.reshape(1, -1).astype(jnp.float32), 1, fout_lp,
                     jnp.float32)

        if fout_lp < fin_lp:
            # Matmul associativity: transform first, aggregate at width Fout.
            z = feature_transform(h, w_p, block_m=block_m,
                                  compute_dtype=compute_dtype)
            x_res = z.size * z.dtype.itemsize <= x_resident_bytes
            h = gcn_aggregate(adj_p, z, b_p, None,
                              block_m=block_m, block_k=block_k,
                              x_resident=x_res, apply_act=apply_act,
                              compute_dtype=compute_dtype)
        else:
            x_res = h.size * h.dtype.itemsize <= x_resident_bytes
            h = gcn_aggregate(adj_p, h, b_p, w_p,
                              block_m=block_m, block_k=block_k,
                              x_resident=x_res, apply_act=apply_act,
                              compute_dtype=compute_dtype)

    out_feats = params[-1][0].shape[1]
    return h[:n, :out_feats].astype(jnp.float32)


def init_gcn_params(key, in_feats, n_hidden, n_classes, n_layers):
    """nn.Linear-style init; weights stored pre-transposed as (in, out)."""
    if n_layers < 2:
        dims = [(in_feats, n_classes)]
    else:
        dims = ([(in_feats, n_hidden)]
                + [(n_hidden, n_hidden)] * (n_layers - 2)
                + [(n_hidden, n_classes)])
    params = []
    for fin, fout in dims:
        key, k1, k2 = jax.random.split(key, 3)
        s = 1.0 / jnp.sqrt(jnp.float32(fin))
        w = jax.random.uniform(k1, (fin, fout), jnp.float32, -s, s)
        b = jax.random.uniform(k2, (fout,), jnp.float32, -s, s)
        params.append((w, b))
    return params


# ---------------------------------------------------------------------------
# Demo
# ---------------------------------------------------------------------------
if __name__ == "__main__":
    N = 200           # deliberately not a multiple of 128 -> exercises padding
    IN_FEATS = 48
    N_HIDDEN = 256    # layer 0 (48 -> 256) takes the fused path,
    N_CLASSES = 10    # layer 1 (256 -> 10) takes the transform-first path
    N_LAYERS = 2

    key = jax.random.PRNGKey(0)
    k_feat, k_mask, k_wgt, k_param = jax.random.split(key, 4)

    features = jax.random.normal(k_feat, (N, IN_FEATS), jnp.float32)

    # Weighted adjacency: adj_w[i, j] = weight of edge j -> i (0 if no edge),
    # plus unit-weight self-loops so every node receives at least one message.
    mask = (jax.random.uniform(k_mask, (N, N)) < 0.05).astype(jnp.float32)
    weights = jax.random.uniform(k_wgt, (N, N), jnp.float32, 0.1, 1.0)
    adj_w = jnp.maximum(mask * weights, jnp.eye(N, dtype=jnp.float32))

    params = init_gcn_params(k_param, IN_FEATS, N_HIDDEN, N_CLASSES, N_LAYERS)

    _resident_buffer_count()   # probe Buffered(1) support once, eagerly

    fwd = jax.jit(gcn_forward)
    out = jax.block_until_ready(fwd(adj_w, features, params))

    assert out.shape == (N, N_CLASSES), out.shape
    assert bool(jnp.all(jnp.isfinite(out)))

    # Pure-JAX f32 reference (same math; loose tolerance for bf16 + int8 adj).
    h_ref = features
    for li, (w, b) in enumerate(params):
        h_ref = adj_w @ h_ref
        h_ref = h_ref @ w + b
        if li < len(params) - 1:
            h_ref = jnp.maximum(h_ref, 0.0)
    err = jnp.max(jnp.abs(out - h_ref)) / (jnp.max(jnp.abs(h_ref)) + 1e-6)
    assert float(err) < 5e-2, float(err)

    print("KERNEL_OK")
</pallas_src>

<mosaic_0001>
module attributes {stable_mosaic.version = 11 : i64} {
  func.func @_probe_kernel(%arg0: i32, %arg1: memref<8x128xf32, #tpu.memory_space<vmem>>, %arg2: memref<8x128xf32, #tpu.memory_space<vmem>>) attributes {dimension_semantics = [#tpu.dimension_semantics<arbitrary>], iteration_bounds = array<i64: 1>, scalar_prefetch = 0 : i64, scratch_operands = 0 : i64, tpu.core_type = #tpu.core_type<tc>, window_params = [{pipeline_mode = #tpu.pipeline_mode<synchronous>, transform_indices = @transform_0, window_bounds = array<i64: 8, 128>}, {pipeline_mode = #tpu.pipeline_mode<synchronous>, transform_indices = @transform_1, window_bounds = array<i64: 8, 128>}]} {
    %c0 = arith.constant 0 : index
    %c0_0 = arith.constant 0 : index
    %0 = vector.load %arg1[%c0, %c0_0] : memref<8x128xf32, #tpu.memory_space<vmem>>, vector<8x128xf32>
    %cst = arith.constant 1.000000e+00 : f32
    %1 = vector.broadcast %cst : f32 to vector<8x128xf32>
    %2 = arith.addf %0, %1 : vector<8x128xf32>
    %c0_1 = arith.constant 0 : index
    %c0_2 = arith.constant 0 : index
    %3 = vector.load %arg2[%c0_1, %c0_2] : memref<8x128xf32, #tpu.memory_space<vmem>>, vector<8x128xf32>
    tpu.vector_store %arg2[%c0_1, %c0_2], %2 {strides = array<i32>} : memref<8x128xf32, #tpu.memory_space<vmem>>, vector<8x128xf32>,
    return
  }
  func.func @transform_0(%arg0: i32) -> (i32, i32) {
    %c0_i32 = arith.constant 0 : i32
    %c0_i32_0 = arith.constant 0 : i32
    %c0_i32_1 = arith.constant 0 : i32
    return %c0_i32, %c0_i32_0 : i32, i32
  }
  func.func @transform_1(%arg0: i32) -> (i32, i32) {
    %c0_i32 = arith.constant 0 : i32
    %c0_i32_0 = arith.constant 0 : i32
    %c0_i32_1 = arith.constant 0 : i32
    return %c0_i32, %c0_i32_0 : i32, i32
  }
}

module attributes {stable_mosaic.version = 11 : i64} {
  func.func @_gcn_aggregate_kernel(%arg0: i32, %arg1: i32, %arg2: memref<128x256xi8, #tpu.memory_space<vmem>>, %arg3: memref<256x128xbf16, #tpu.memory_space<vmem>>, %arg4: memref<128x256xbf16, #tpu.memory_space<vmem>>, %arg5: memref<1x256xf32, #tpu.memory_space<vmem>>, %arg6: memref<128x256xbf16, #tpu.memory_space<vmem>>, %arg7: memref<128x128xf32, #tpu.memory_space<vmem>>) attributes {dimension_semantics = [#tpu.dimension_semantics<parallel>, #tpu.dimension_semantics<arbitrary>], iteration_bounds = array<i64: 2, 1>, scalar_prefetch = 0 : i64, scratch_operands = 1 : i64, tpu.core_type = #tpu.core_type<tc>, window_params = [{transform_indices = @transform_0, window_bounds = array<i64: 128, 256>}, {pipeline_mode = #tpu.pipeline_mode<synchronous>, transform_indices = @transform_1, window_bounds = array<i64: 256, 128>}, {pipeline_mode = #tpu.pipeline_mode<synchronous>, transform_indices = @transform_2, window_bounds = array<i64: 128, 256>}, {pipeline_mode = #tpu.pipeline_mode<synchronous>, transform_indices = @transform_3, window_bounds = array<i64: 1, 256>}, {transform_indices = @transform_4, window_bounds = array<i64: 128, 256>}]} {
    %c0_i32 = arith.constant 0 : i32
    %0 = arith.cmpi eq, %arg1, %c0_i32 : i32
    %1 = arith.extui %0 : i1 to i32
    %c0_i32_0 = arith.constant 0 : i32
    %2 = arith.cmpi ne, %1, %c0_i32_0 : i32
    scf.if %2 {
      %cst_9 = arith.constant 0.000000e+00 : f32
      %16 = vector.broadcast %cst_9 : f32 to vector<128x128xf32>
      %c0_10 = arith.constant 0 : index
      %c0_11 = arith.constant 0 : index
      %17 = vector.load %arg7[%c0_10, %c0_11] : memref<128x128xf32, #tpu.memory_space<vmem>>, vector<128x128xf32>
      tpu.vector_store %arg7[%c0_10, %c0_11], %16 {strides = array<i32>} : memref<128x128xf32, #tpu.memory_space<vmem>>, vector<128x128xf32>,
    } else {
    }
    %c256_i32 = arith.constant 256 : i32
    %3 = arith.muli %arg1, %c256_i32 : i32
    %4 = tpu.assume_multiple %3, 256 : i32
    %5 = arith.index_cast %4 : i32 to index
    %c0 = arith.constant 0 : index
    %6 = vector.load %arg3[%5, %c0] : memref<256x128xbf16, #tpu.memory_space<vmem>>, vector<256x128xbf16>
    %c0_1 = arith.constant 0 : index
    %c0_2 = arith.constant 0 : index
    %7 = vector.load %arg2[%c0_1, %c0_2] : memref<128x256xi8, #tpu.memory_space<vmem>>, vector<128x256xi8>
    %8 = arith.sitofp %7 : vector<128x256xi8> to vector<128x256xbf16>
    %c0_3 = arith.constant 0 : index
    %c0_4 = arith.constant 0 : index
    %9 = vector.load %arg7[%c0_3, %c0_4] : memref<128x128xf32, #tpu.memory_space<vmem>>, vector<128x128xf32>
    %cst = arith.constant dense<0.000000e+00> : vector<128x128xf32>
    %10 = tpu.matmul %8, %6, %cst {dimension_numbers = #tpu.dot_dimension_numbers<[1], [0], [0], [1], [0, 0, 1, 1], [], []>} : vector<128x256xbf16>, vector<256x128xbf16>, vector<128x128xf32> -> vector<128x128xf32>
    %11 = arith.addf %9, %10 : vector<128x128xf32>
    %c0_5 = arith.constant 0 : index
    %c0_6 = arith.constant 0 : index
    %12 = vector.load %arg7[%c0_5, %c0_6] : memref<128x128xf32, #tpu.memory_space<vmem>>, vector<128x128xf32>
    tpu.vector_store %arg7[%c0_5, %c0_6], %11 {strides = array<i32>} : memref<128x128xf32, #tpu.memory_space<vmem>>, vector<128x128xf32>,
    %c0_i32_7 = arith.constant 0 : i32
    %13 = arith.cmpi eq, %arg1, %c0_i32_7 : i32
    %14 = arith.extui %13 : i1 to i32
    %c0_i32_8 = arith.constant 0 : i32
    %15 = arith.cmpi ne, %14, %c0_i32_8 : i32
    scf.if %15 {
      %c0_9 = arith.constant 0 : index
      %c0_10 = arith.constant 0 : index
      %16 = vector.load %arg7[%c0_9, %c0_10] : memref<128x128xf32, #tpu.memory_space<vmem>>, vector<128x128xf32>
      %17 = arith.truncf %16 : vector<128x128xf32> to vector<128x128xbf16>
      %c0_11 = arith.constant 0 : index
      %c0_12 = arith.constant 0 : index
      %18 = vector.load %arg4[%c0_11, %c0_12] : memref<128x256xbf16, #tpu.memory_space<vmem>>, vector<128x256xbf16>
      %cst_13 = arith.constant dense<0.000000e+00> : vector<128x256xf32>
      %19 = tpu.matmul %17, %18, %cst_13 {dimension_numbers = #tpu.dot_dimension_numbers<[1], [0], [0], [1], [0, 0, 1, 1], [], []>} : vector<128x128xbf16>, vector<128x256xbf16>, vector<128x256xf32> -> vector<128x256xf32>
      %c0_14 = arith.constant 0 : index
      %c0_15 = arith.constant 0 : index
      %20 = vector.load %arg5[%c0_14, %c0_15] : memref<1x256xf32, #tpu.memory_space<vmem>>, vector<1x256xf32>
      %21 = vector.broadcast %20 : vector<1x256xf32> to vector<128x256xf32>
      %22 = arith.addf %19, %21 : vector<128x256xf32>
      %cst_16 = arith.constant 0.000000e+00 : f32
      %23 = vector.broadcast %cst_16 : f32 to vector<128x256xf32>
      %24 = arith.maximumf %22, %23 : vector<128x256xf32>
      %25 = arith.truncf %24 : vector<128x256xf32> to vector<128x256xbf16>
      %c0_17 = arith.constant 0 : index
      %c0_18 = arith.constant 0 : index
      %26 = vector.load %arg6[%c0_17, %c0_18] : memref<128x256xbf16, #tpu.memory_space<vmem>>, vector<128x256xbf16>
      tpu.vector_store %arg6[%c0_17, %c0_18], %25 {strides = array<i32>} : memref<128x256xbf16, #tpu.memory_space<vmem>>, vector<128x256xbf16>,
    } else {
    }
    return
  }
  func.func @transform_0(%arg0: i32, %arg1: i32) -> (i32, i32) {
    %c0_i32 = arith.constant 0 : i32
    return %arg0, %arg1 : i32, i32
  }
  func.func @transform_1(%arg0: i32, %arg1: i32) -> (i32, i32) {
    %c0_i32 = arith.constant 0 : i32
    %c0_i32_0 = arith.constant 0 : i32
    %c0_i32_1 = arith.constant 0 : i32
    return %c0_i32, %c0_i32_0 : i32, i32
  }
  func.func @transform_2(%arg0: i32, %arg1: i32) -> (i32, i32) {
    %c0_i32 = arith.constant 0 : i32
    %c0_i32_0 = arith.constant 0 : i32
    %c0_i32_1 = arith.constant 0 : i32
    return %c0_i32, %c0_i32_0 : i32, i32
  }
  func.func @transform_3(%arg0: i32, %arg1: i32) -> (i32, i32) {
    %c0_i32 = arith.constant 0 : i32
    %c0_i32_0 = arith.constant 0 : i32
    %c0_i32_1 = arith.constant 0 : i32
    return %c0_i32, %c0_i32_0 : i32, i32
  }
  func.func @transform_4(%arg0: i32, %arg1: i32) -> (i32, i32) {
    %c0_i32 = arith.constant 0 : i32
    %c0_i32_0 = arith.constant 0 : i32
    return %arg0, %c0_i32 : i32, i32
  }
}

module attributes {stable_mosaic.version = 11 : i64} {
  func.func @_feature_transform_kernel(%arg0: i32, %arg1: memref<128x256xbf16, #tpu.memory_space<vmem>>, %arg2: memref<256x128xbf16, #tpu.memory_space<vmem>>, %arg3: memref<128x128xbf16, #tpu.memory_space<vmem>>) attributes {dimension_semantics = [#tpu.dimension_semantics<parallel>], iteration_bounds = array<i64: 2>, scalar_prefetch = 0 : i64, scratch_operands = 0 : i64, tpu.core_type = #tpu.core_type<tc>, window_params = [{transform_indices = @transform_0, window_bounds = array<i64: 128, 256>}, {pipeline_mode = #tpu.pipeline_mode<synchronous>, transform_indices = @transform_1, window_bounds = array<i64: 256, 128>}, {transform_indices = @transform_2, window_bounds = array<i64: 128, 128>}]} {
    %c0 = arith.constant 0 : index
    %c0_0 = arith.constant 0 : index
    %0 = vector.load %arg1[%c0, %c0_0] : memref<128x256xbf16, #tpu.memory_space<vmem>>, vector<128x256xbf16>
    %c0_1 = arith.constant 0 : index
    %c0_2 = arith.constant 0 : index
    %1 = vector.load %arg2[%c0_1, %c0_2] : memref<256x128xbf16, #tpu.memory_space<vmem>>, vector<256x128xbf16>
    %cst = arith.constant dense<0.000000e+00> : vector<128x128xf32>
    %2 = tpu.matmul %0, %1, %cst {dimension_numbers = #tpu.dot_dimension_numbers<[1], [0], [0], [1], [0, 0, 1, 1], [], []>} : vector<128x256xbf16>, vector<256x128xbf16>, vector<128x128xf32> -> vector<128x128xf32>
    %3 = arith.truncf %2 : vector<128x128xf32> to vector<128x128xbf16>
    %c0_3 = arith.constant 0 : index
    %c0_4 = arith.constant 0 : index
    %4 = vector.load %arg3[%c0_3, %c0_4] : memref<128x128xbf16, #tpu.memory_space<vmem>>, vector<128x128xbf16>
    tpu.vector_store %arg3[%c0_3, %c0_4], %3 {strides = array<i32>} : memref<128x128xbf16, #tpu.memory_space<vmem>>, vector<128x128xbf16>,
    return
  }
  func.func @transform_0(%arg0: i32) -> (i32, i32) {
    %c0_i32 = arith.constant 0 : i32
    %c0_i32_0 = arith.constant 0 : i32
    return %arg0, %c0_i32 : i32, i32
  }
  func.func @transform_1(%arg0: i32) -> (i32, i32) {
    %c0_i32 = arith.constant 0 : i32
    %c0_i32_0 = arith.constant 0 : i32
    %c0_i32_1 = arith.constant 0 : i32
    return %c0_i32, %c0_i32_0 : i32, i32
  }
  func.func @transform_2(%arg0: i32) -> (i32, i32) {
    %c0_i32 = arith.constant 0 : i32
    %c0_i32_0 = arith.constant 0 : i32
    return %arg0, %c0_i32 : i32, i32
  }
}

module attributes {stable_mosaic.version = 11 : i64} {
  func.func @_gcn_aggregate_kernel(%arg0: i32, %arg1: i32, %arg2: memref<128x256xi8, #tpu.memory_space<vmem>>, %arg3: memref<256x128xbf16, #tpu.memory_space<vmem>>, %arg4: memref<1x128xf32, #tpu.memory_space<vmem>>, %arg5: memref<128x128xbf16, #tpu.memory_space<vmem>>, %arg6: memref<128x128xf32, #tpu.memory_space<vmem>>) attributes {dimension_semantics = [#tpu.dimension_semantics<parallel>, #tpu.dimension_semantics<arbitrary>], iteration_bounds = array<i64: 2, 1>, scalar_prefetch = 0 : i64, scratch_operands = 1 : i64, tpu.core_type = #tpu.core_type<tc>, window_params = [{transform_indices = @transform_0, window_bounds = array<i64: 128, 256>}, {pipeline_mode = #tpu.pipeline_mode<synchronous>, transform_indices = @transform_1, window_bounds = array<i64: 256, 128>}, {pipeline_mode = #tpu.pipeline_mode<synchronous>, transform_indices = @transform_2, window_bounds = array<i64: 1, 128>}, {transform_indices = @transform_3, window_bounds = array<i64: 128, 128>}]} {
    %c0_i32 = arith.constant 0 : i32
    %0 = arith.cmpi eq, %arg1, %c0_i32 : i32
    %1 = arith.extui %0 : i1 to i32
    %c0_i32_0 = arith.constant 0 : i32
    %2 = arith.cmpi ne, %1, %c0_i32_0 : i32
    scf.if %2 {
      %cst_9 = arith.constant 0.000000e+00 : f32
      %16 = vector.broadcast %cst_9 : f32 to vector<128x128xf32>
      %c0_10 = arith.constant 0 : index
      %c0_11 = arith.constant 0 : index
      %17 = vector.load %arg6[%c0_10, %c0_11] : memref<128x128xf32, #tpu.memory_space<vmem>>, vector<128x128xf32>
      tpu.vector_store %arg6[%c0_10, %c0_11], %16 {strides = array<i32>} : memref<128x128xf32, #tpu.memory_space<vmem>>, vector<128x128xf32>,
    } else {
    }
    %c256_i32 = arith.constant 256 : i32
    %3 = arith.muli %arg1, %c256_i32 : i32
    %4 = tpu.assume_multiple %3, 256 : i32
    %5 = arith.index_cast %4 : i32 to index
    %c0 = arith.constant 0 : index
    %6 = vector.load %arg3[%5, %c0] : memref<256x128xbf16, #tpu.memory_space<vmem>>, vector<256x128xbf16>
    %c0_1 = arith.constant 0 : index
    %c0_2 = arith.constant 0 : index
    %7 = vector.load %arg2[%c0_1, %c0_2] : memref<128x256xi8, #tpu.memory_space<vmem>>, vector<128x256xi8>
    %8 = arith.sitofp %7 : vector<128x256xi8> to vector<128x256xbf16>
    %c0_3 = arith.constant 0 : index
    %c0_4 = arith.constant 0 : index
    %9 = vector.load %arg6[%c0_3, %c0_4] : memref<128x128xf32, #tpu.memory_space<vmem>>, vector<128x128xf32>
    %cst = arith.constant dense<0.000000e+00> : vector<128x128xf32>
    %10 = tpu.matmul %8, %6, %cst {dimension_numbers = #tpu.dot_dimension_numbers<[1], [0], [0], [1], [0, 0, 1, 1], [], []>} : vector<128x256xbf16>, vector<256x128xbf16>, vector<128x128xf32> -> vector<128x128xf32>
    %11 = arith.addf %9, %10 : vector<128x128xf32>
    %c0_5 = arith.constant 0 : index
    %c0_6 = arith.constant 0 : index
    %12 = vector.load %arg6[%c0_5, %c0_6] : memref<128x128xf32, #tpu.memory_space<vmem>>, vector<128x128xf32>
    tpu.vector_store %arg6[%c0_5, %c0_6], %11 {strides = array<i32>} : memref<128x128xf32, #tpu.memory_space<vmem>>, vector<128x128xf32>,
    %c0_i32_7 = arith.constant 0 : i32
    %13 = arith.cmpi eq, %arg1, %c0_i32_7 : i32
    %14 = arith.extui %13 : i1 to i32
    %c0_i32_8 = arith.constant 0 : i32
    %15 = arith.cmpi ne, %14, %c0_i32_8 : i32
    scf.if %15 {
      %c0_9 = arith.constant 0 : index
      %c0_10 = arith.constant 0 : index
      %16 = vector.load %arg6[%c0_9, %c0_10] : memref<128x128xf32, #tpu.memory_space<vmem>>, vector<128x128xf32>
      %c0_11 = arith.constant 0 : index
      %c0_12 = arith.constant 0 : index
      %17 = vector.load %arg4[%c0_11, %c0_12] : memref<1x128xf32, #tpu.memory_space<vmem>>, vector<1x128xf32>
      %18 = vector.broadcast %17 : vector<1x128xf32> to vector<128x128xf32>
      %19 = arith.addf %16, %18 : vector<128x128xf32>
      %20 = arith.truncf %19 : vector<128x128xf32> to vector<128x128xbf16>
      %c0_13 = arith.constant 0 : index
      %c0_14 = arith.constant 0 : index
      %21 = vector.load %arg5[%c0_13, %c0_14] : memref<128x128xbf16, #tpu.memory_space<vmem>>, vector<128x128xbf16>
      tpu.vector_store %arg5[%c0_13, %c0_14], %20 {strides = array<i32>} : memref<128x128xbf16, #tpu.memory_space<vmem>>, vector<128x128xbf16>,
    } else {
    }
    return
  }
  func.func @transform_0(%arg0: i32, %arg1: i32) -> (i32, i32) {
    %c0_i32 = arith.constant 0 : i32
    return %arg0, %arg1 : i32, i32
  }
  func.func @transform_1(%arg0: i32, %arg1: i32) -> (i32, i32) {
    %c0_i32 = arith.constant 0 : i32
    %c0_i32_0 = arith.constant 0 : i32
    %c0_i32_1 = arith.constant 0 : i32
    return %c0_i32, %c0_i32_0 : i32, i32
  }
  func.func @transform_2(%arg0: i32, %arg1: i32) -> (i32, i32) {
    %c0_i32 = arith.constant 0 : i32
    %c0_i32_0 = arith.constant 0 : i32
    %c0_i32_1 = arith.constant 0 : i32
    return %c0_i32, %c0_i32_0 : i32, i32
  }
  func.func @transform_3(%arg0: i32, %arg1: i32) -> (i32, i32) {
    %c0_i32 = arith.constant 0 : i32
    %c0_i32_0 = arith.constant 0 : i32
    return %arg0, %c0_i32 : i32, i32
  }
}

</mosaic_0001>

<llo_original>
// kernel: tpu_custom_call.1
$region0: #{tpu_custom_call.1}
  #allocation0 [shape = 'u32[]', space=smem, size = 0x4, offset = 0x4, fixed_abs, tag = 'smem constant byte address 0x4 - core index']
  #allocation1 [shape = 'u32[144,128]{1,0:T(1,128)}', space=vmem, size = 0x12000, scoped, tag = 'internal scratch']
  %s0 = inlined_call_operand.hbm [shape: f32[8,128], index: 0, kind: input, shape index: {}]
  %s1 = inlined_call_operand.hbm [shape: f32[8,128], index: 1, kind: output, shape index: {}]
  %s2 = sld [smem:[#allocation0]]
  $region18: #{tpu_custom_call.1} parent=0
    _
  %s4 = ssub.s32 1, %s2
  %s5 = scalar_select 0, %s4, %s2
  $region1: #{tpu_custom_call.1} parent=0
    #allocation2 [shape = 'u8[4096]{0}', space=vmem, size = 0x1000, scoped, tag = 'input window, operand 0, single buffered']
    #allocation3 [shape = 's32[1]{0}', space=sflag, size = 0x4, scoped, tag = 'scoped memory for tpu_custom_call.1']
    #allocation4 [shape = 's32[1]{0}', space=sflag, size = 0x4, scoped, tag = 'scoped memory for tpu_custom_call.1']
    #allocation5 [shape = 'u8[4096]{0}', space=vmem, size = 0x1000, scoped, tag = 'output window, operand 0, single buffered']
    %6 = vsyncpa [#allocation3], 0
    %7 = vsyncpa [#allocation4], 0
    // Predicated region
    $region2: #{tpu_custom_call.1} parent=1 // pred_check
      _
    $region3: #{tpu_custom_call.1} parent=1 // pred_check_branch
      %9 = sbr.rel (0) target = $region5
    $region4: #{tpu_custom_call.1} parent=1 // pred_region
      %s11 = ssub.s32 128, 128
      %12 = vsyncadd [#allocation3], %s11
      %s14 = sshll.u32 [#allocation2], 4
      %s15 = int_to_ptr.vmem [resolvable:$true] %s14
      %17 = dma.hbm_to_vmem [thread:$0]  %s0, 128, %s15, [#allocation3]
    $region5: #{tpu_custom_call.1} parent=1 // pred_fallthru
      _
    // Predicated region
    $region6: #{tpu_custom_call.1} parent=1 // pred_check
      _
    $region7: #{tpu_custom_call.1} parent=1 // pred_check_branch
      %19 = sbr.rel (0) target = $region9
    $region8: #{tpu_custom_call.1} parent=1 // pred_region
      %20 = dma.done [#allocation3], 128
    $region9: #{tpu_custom_call.1} parent=1 // pred_fallthru
      _
    %v21 = vld [vmem:[#allocation2] sm:$0xff]
    %v22 = vadd.f32 %v21, 1.0
    %23 = vst [vmem:[#allocation5] sm:$0xff] %v22
    // Predicated region
    $region10: #{tpu_custom_call.1} parent=1 // pred_check
      _
    $region11: #{tpu_custom_call.1} parent=1 // pred_check_branch
      %25 = sbr.rel (0) target = $region13
    $region12: #{tpu_custom_call.1} parent=1 // pred_region
      %s27 = ssub.s32 128, 128
      %28 = vsyncadd [#allocation4], %s27
      %s30 = sshll.u32 [#allocation5], 4
      %s31 = int_to_ptr.vmem [resolvable:$true] %s30
      %33 = dma.vmem_to_hbm [thread:$0]  %s31, 128, %s1, [#allocation4]
    $region13: #{tpu_custom_call.1} parent=1 // pred_fallthru
      _
    // Predicated region
    $region14: #{tpu_custom_call.1} parent=1 // pred_check
      _
    $region15: #{tpu_custom_call.1} parent=1 // pred_check_branch
      %35 = sbr.rel (0) target = $region17
    $region16: #{tpu_custom_call.1} parent=1 // pred_region
      %36 = dma.done [#allocation4], 128
    $region17: #{tpu_custom_call.1} parent=1 // pred_fallthru
      _
    %37 = vsyncpa [#allocation3], 1
    %38 = vsyncpa [#allocation4], 1

// kernel: gcn_forward.4
$region0: #{gcn_forward.4}
  #allocation0 [shape = 'u32[]', space=smem, size = 0x4, offset = 0x4, fixed_abs, tag = 'smem constant byte address 0x4 - core index']
  #allocation1 [shape = 'u32[144,128]{1,0:T(1,128)}', space=vmem, size = 0x12000, scoped, tag = 'internal scratch']
  %s0 = inlined_call_operand.vmem [shape: bf16[256,256], index: 0, kind: input, shape index: {}]
  %s1 = inlined_call_operand.vmem [shape: bf16[256,128], index: 1, kind: input, shape index: {}]
  %s2 = inlined_call_operand.vmem [shape: bf16[256,128], index: 2, kind: output, shape index: {}]
  %s3 = sld [smem:[#allocation0]]
  $region41: #{gcn_forward.4} parent=0
    _
  %s5 = ssub.s32 1, %s3
  %s6 = scalar_select 0, %s5, %s3
  loop: start=0, step=1, limit=4
  $region2: #{gcn_forward.4} parent=0 // loop_pre_header
    _
  $region3: #{gcn_forward.4} parent=0 // loop_header
    %s8 = sphi 0, %s12
    %p9 = scmp.ge.s32.totalorder %s8, 4
    %s18 = sphi 0, %s20
    %s21 = sphi 0, %s18
    %s22 = sphi 0, %s21
    %s38 = sphi 0, %s22
    %s42 = sphi 0, %s42
    %s44 = sphi 0, %s42
    %s45 = sphi 0, %s44
    %s59 = sphi 0, %s45
    %s65 = sphi 0, %s67
    %s68 = sphi 0, %s65
    %s69 = sphi 0, %s68
    %s85 = sphi 0, %s69
  $region4: #{gcn_forward.4} parent=0 // loop_header_branch
    %11 = sbr.rel (%p9) target = $region8
  $region5: #{gcn_forward.4} parent=0 // loop_body
    %s13 = ssub.s32 %s8, 1
    %s14 = ssub.s32 %s8, 2
    %s15 = sadd.s32 %s8, 1
    %s16 = ssub.s32 %s8, %s15
    %p17 = scmp.eq.s32.totalorder %s16, 0
    %s19 = sadd.s32 %s18, 1
    %s20 = scalar_select %p17, %s18, %s19
    %p23 = pneg %p17
    %p24 = scmp.eq.s32.totalorder %s8, 1
    %p25 = por %p23, %p24
    %p26 = scmp.ne.s32.totalorder %s18, %s21
    %p27 = scmp.eq.s32.totalorder %s8, 0
    %p28 = por %p26, %p27
    %p29 = scmp.ne.s32.totalorder %s18, %s21
    %p30 = scmp.eq.s32.totalorder %s13, 1
    %p31 = por %p29, %p30
    %p32 = scmp.ne.s32.totalorder %s21, %s22
    %p33 = scmp.eq.s32.totalorder %s13, 0
    %p34 = por %p32, %p33
    %p35 = scmp.ne.s32.totalorder %s21, %s22
    %p36 = scmp.eq.s32.totalorder %s14, 1
    %p37 = por %p35, %p36
    %p39 = scmp.ne.s32.totalorder %s22, %s38
    %p40 = scmp.eq.s32.totalorder %s14, 0
    %p41 = por %p39, %p40
    %s43 = sadd.s32 %s42, 1
    %p46 = scmp.eq.s32.totalorder %s8, 1
    %p47 = scmp.ne.s32.totalorder %s42, %s44
    %p48 = scmp.eq.s32.totalorder %s8, 0
    %p49 = por %p47, %p48
    %p50 = scmp.ne.s32.totalorder %s42, %s44
    %p51 = scmp.eq.s32.totalorder %s13, 1
    %p52 = por %p50, %p51
    %p53 = scmp.ne.s32.totalorder %s44, %s45
    %p54 = scmp.eq.s32.totalorder %s13, 0
    %p55 = por %p53, %p54
    %p56 = scmp.ne.s32.totalorder %s44, %s45
    %p57 = scmp.eq.s32.totalorder %s14, 1
    %p58 = por %p56, %p57
    %p60 = scmp.ne.s32.totalorder %s45, %s59
    %p61 = scmp.eq.s32.totalorder %s14, 0
    %p62 = por %p60, %p61
    %s63 = ssub.s32 %s8, %s15
    %p64 = scmp.eq.s32.totalorder %s63, 0
    %s66 = sadd.s32 %s65, 1
    %s67 = scalar_select %p64, %s65, %s66
    %p70 = pneg %p64
    %p71 = scmp.eq.s32.totalorder %s8, 1
    %p72 = por %p70, %p71
    %p73 = scmp.ne.s32.totalorder %s65, %s68
    %p74 = scmp.eq.s32.totalorder %s8, 0
    %p75 = por %p73, %p74
    %p76 = scmp.ne.s32.totalorder %s65, %s68
    %p77 = scmp.eq.s32.totalorder %s13, 1
    %p78 = por %p76, %p77
    %p79 = scmp.ne.s32.totalorder %s68, %s69
    %p80 = scmp.eq.s32.totalorder %s13, 0
    %p81 = por %p79, %p80
    %p82 = scmp.ne.s32.totalorder %s68, %s69
    %p83 = scmp.eq.s32.totalorder %s14, 1
    %p84 = por %p82, %p83
    %p86 = scmp.ne.s32.totalorder %s69, %s85
    %p87 = scmp.eq.s32.totalorder %s14, 0
    %p88 = por %p86, %p87
    %p89 = scmp.le.s32.totalorder 1, %s8
    %p90 = scmp.lt.s32.totalorder %s8, 3
    %p91 = pnand %p89, %p90
    %p92 = pneg %p91
    // Predicated region
    $region9: #{gcn_forward.4} parent=5 // pred_check
      _
    $region10: #{gcn_forward.4} parent=5 // pred_check_branch
      %94 = sbr.rel (%p91) target = $region12
    $region11: #{gcn_forward.4} parent=5 // pred_region
      %s95 = ssub.s32 %s8, 1
      // Predicated region
      $region13: #{gcn_forward.4} parent=11 // pred_check
        %p96 = pneg %p55
      $region14: #{gcn_forward.4} parent=11 // pred_check_branch
        %98 = sbr.rel (%p96) target = $region16
      $region15: #{gcn_forward.4} parent=11 // pred_region
        _
      $region16: #{gcn_forward.4} parent=11 // pred_fallthru
        _
    $region12: #{gcn_forward.4} parent=5 // pred_fallthru
      _
    %p99 = scmp.lt.s32.totalorder %s8, 2
    // Predicated region
    $region17: #{gcn_forward.4} parent=5 // pred_check
      %p100 = pneg %p99
    $region18: #{gcn_forward.4} parent=5 // pred_check_branch
      %102 = sbr.rel (%p100) target = $region20
    $region19: #{gcn_forward.4} parent=5 // pred_region
      // Predicated region
      $region21: #{gcn_forward.4} parent=19 // pred_check
        %p103 = pneg %p28
      $region22: #{gcn_forward.4} parent=19 // pred_check_branch
        %105 = sbr.rel (%p103) target = $region24
      $region23: #{gcn_forward.4} parent=19 // pred_region
        %s106 = smul.u32 16, %s8
        %p107 = scmp.lt.s32.totalorder %s106, 31
        %s108 = scalar_select %p107, %s106, 31
        %s109 = smul.addr %s108, 2
        %s110 = smul.addr %s109, 4
        %s111 = scalar_lea.vmem %s0, %s110
        %s112 = smul.u32 16, %s8
      $region24: #{gcn_forward.4} parent=19 // pred_fallthru
        _
    $region20: #{gcn_forward.4} parent=5 // pred_fallthru
      _
    %p113 = scmp.le.s32.totalorder 1, %s8
    %p114 = scmp.lt.s32.totalorder %s8, 3
    %p115 = pnand %p113, %p114
    %p116 = pneg %p115
    // Predicated region
    $region25: #{gcn_forward.4} parent=5 // pred_check
      _
    $region26: #{gcn_forward.4} parent=5 // pred_check_branch
      %118 = sbr.rel (%p115) target = $region28
    $region27: #{gcn_forward.4} parent=5 // pred_region
      %s119 = ssub.s32 %s8, 1
      %s120 = smul.u32 16, %s13
      %p121 = scmp.lt.s32.totalorder %s120, 31
      %s122 = scalar_select %p121, %s120, 31
      %s123 = smul.addr %s122, 2
      %s124 = smul.addr %s123, 4
      %s125 = scalar_lea.vmem %s0, %s124
      %p126 = pneg %p34
      %p127 = pneg %p31
      %p128 = pneg %p55
      %p129 = pneg %p52
      %p130 = pneg %p81
      %p131 = pneg %p78
      %s132 = smul.u32 16, %s13
      %p133 = scmp.lt.s32.totalorder %s132, 31
      %s134 = scalar_select %p133, %s132, 31
      %s135 = smul.addr %s134, 4
      %s136 = scalar_lea.vmem %s2, %s135
      %s137 = smul.u32 16, %s13
      %p138 = scmp.lt.s32.totalorder %s137, 31
      %s139 = scalar_select %p138, %s137, 31
      %s140 = smul.addr %s139, 2
      %s141 = smul.addr %s140, 4
      %s142 = scalar_lea.vmem %s0, %s141
      %s143 = smul.u32 16, %s13
      %s144 = smul.u32 16, %s13
      %p145 = scmp.lt.s32.totalorder %s144, 31
      %s146 = scalar_select %p145, %s144, 31
      %s147 = smul.addr %s146, 4
      %s148 = scalar_lea.vmem %s2, %s147
      %s149 = smul.u32 16, %s13
      %v151 = vld [vmem:[%s142] sm:$0xff]
      %v152 = vld [vmem:[%s142 + $0x8] sm:$0xff]
      %v153 = vld [vmem:[%s142 + $0x10] sm:$0xff]
      %v154 = vld [vmem:[%s142 + $0x18] sm:$0xff]
      %v155 = vld [vmem:[%s142 + $0x20] sm:$0xff]
      %v156 = vld [vmem:[%s142 + $0x28] sm:$0xff]
      %v157 = vld [vmem:[%s142 + $0x30] sm:$0xff]
      %v158 = vld [vmem:[%s142 + $0x38] sm:$0xff]
      %v159 = vld [vmem:[%s142 + $0x40] sm:$0xff]
      %v160 = vld [vmem:[%s142 + $0x48] sm:$0xff]
      %v161 = vld [vmem:[%s142 + $0x50] sm:$0xff]
      %v162 = vld [vmem:[%s142 + $0x58] sm:$0xff]
      %v163 = vld [vmem:[%s142 + $0x60] sm:$0xff]
      %v164 = vld [vmem:[%s142 + $0x68] sm:$0xff]
      %v165 = vld [vmem:[%s142 + $0x70] sm:$0xff]
      %v166 = vld [vmem:[%s142 + $0x78] sm:$0xff]
      %v167 = vld [vmem:[%s1] sm:$0xf]
      %v168 = vld [vmem:[%s1 + $0x4] sm:$0xf]
      %v169 = vld [vmem:[%s1 + $0x8] sm:$0xf]
      %v170 = vld [vmem:[%s1 + $0xc] sm:$0xf]
      %v171 = vld [vmem:[%s1 + $0x10] sm:$0xf]
      %v172 = vld [vmem:[%s1 + $0x14] sm:$0xf]
      %v173 = vld [vmem:[%s1 + $0x18] sm:$0xf]
      %v174 = vld [vmem:[%s1 + $0x1c] sm:$0xf]
      %v175 = vld [vmem:[%s1 + $0x20] sm:$0xf]
      %v176 = vld [vmem:[%s1 + $0x24] sm:$0xf]
      %v177 = vld [vmem:[%s1 + $0x28] sm:$0xf]
      %v178 = vld [vmem:[%s1 + $0x2c] sm:$0xf]
      %v179 = vld [vmem:[%s1 + $0x30] sm:$0xf]
      %v180 = vld [vmem:[%s1 + $0x34] sm:$0xf]
      %v181 = vld [vmem:[%s1 + $0x38] sm:$0xf]
      %v182 = vld [vmem:[%s1 + $0x3c] sm:$0xf]
      %v183 = vld [vmem:[%s1 + $0x40] sm:$0xf]
      %v184 = vld [vmem:[%s1 + $0x44] sm:$0xf]
      %v185 = vld [vmem:[%s1 + $0x48] sm:$0xf]
      %v186 = vld [vmem:[%s1 + $0x4c] sm:$0xf]
      %v187 = vld [vmem:[%s1 + $0x50] sm:$0xf]
      %v188 = vld [vmem:[%s1 + $0x54] sm:$0xf]
      %v189 = vld [vmem:[%s1 + $0x58] sm:$0xf]
      %v190 = vld [vmem:[%s1 + $0x5c] sm:$0xf]
      %v191 = vld [vmem:[%s1 + $0x60] sm:$0xf]
      %v192 = vld [vmem:[%s1 + $0x64] sm:$0xf]
      %v193 = vld [vmem:[%s1 + $0x68] sm:$0xf]
      %v194 = vld [vmem:[%s1 + $0x6c] sm:$0xf]
      %v195 = vld [vmem:[%s1 + $0x70] sm:$0xf]
      %v196 = vld [vmem:[%s1 + $0x74] sm:$0xf]
      %v197 = vld [vmem:[%s1 + $0x78] sm:$0xf]
      %v198 = vld [vmem:[%s1 + $0x7c] sm:$0xf]
      %v215 = vunpack.c.l.b16 %v151
      %v216 = vunpack.c.h.b16 %v151
      %v217 = vunpack.c.l.b16 %v152
      %v218 = vunpack.c.h.b16 %v152
      %v219 = vunpack.c.l.b16 %v153
      %v220 = vunpack.c.h.b16 %v153
      %v221 = vunpack.c.l.b16 %v154
      %v222 = vunpack.c.h.b16 %v154
      %v223 = vunpack.c.l.b16 %v155
      %v224 = vunpack.c.h.b16 %v155
      %v225 = vunpack.c.l.b16 %v156
      %v226 = vunpack.c.h.b16 %v156
      %v227 = vunpack.c.l.b16 %v157
      %v228 = vunpack.c.h.b16 %v157
      %v229 = vunpack.c.l.b16 %v158
      %v230 = vunpack.c.h.b16 %v158
      %v231 = vunpack.c.l.b16 %v159
      %v232 = vunpack.c.h.b16 %v159
      %v233 = vunpack.c.l.b16 %v160
      %v234 = vunpack.c.h.b16 %v160
      %v235 = vunpack.c.l.b16 %v161
      %v236 = vunpack.c.h.b16 %v161
      %v237 = vunpack.c.l.b16 %v162
      %v238 = vunpack.c.h.b16 %v162
      %v239 = vunpack.c.l.b16 %v163
      %v240 = vunpack.c.h.b16 %v163
      %v241 = vunpack.c.l.b16 %v164
      %v242 = vunpack.c.h.b16 %v164
      %v243 = vunpack.c.l.b16 %v165
      %v244 = vunpack.c.h.b16 %v165
      %v245 = vunpack.c.l.b16 %v166
      %v246 = vunpack.c.h.b16 %v166
      %v247 = vpack.c.b16 %v217, %v215
      %v248 = vpack.c.b16 %v218, %v216
      %v249 = vpack.c.b16 %v221, %v219
      %v250 = vpack.c.b16 %v222, %v220
      %v251 = vpack.c.b16 %v225, %v223
      %v252 = vpack.c.b16 %v226, %v224
      %v253 = vpack.c.b16 %v229, %v227
      %v254 = vpack.c.b16 %v230, %v228
      %v255 = vpack.c.b16 %v233, %v231
      %v256 = vpack.c.b16 %v234, %v232
      %v257 = vpack.c.b16 %v237, %v235
      %v258 = vpack.c.b16 %v238, %v236
      %v259 = vpack.c.b16 %v241, %v239
      %v260 = vpack.c.b16 %v242, %v240
      %v261 = vpack.c.b16 %v245, %v243
      %v262 = vpack.c.b16 %v246, %v244
      %v311 = vunpack.c.l.b16 %v167
      %v312 = vunpack.c.l.b16 %v168
      %v313 = vunpack.c.l.b16 %v169
      %v314 = vunpack.c.l.b16 %v170
      %v315 = vunpack.c.l.b16 %v171
      %v316 = vunpack.c.l.b16 %v172
      %v317 = vunpack.c.l.b16 %v173
      %v318 = vunpack.c.l.b16 %v174
      %v319 = vunpack.c.l.b16 %v175
      %v320 = vunpack.c.l.b16 %v176
      %v321 = vunpack.c.l.b16 %v177
      %v322 = vunpack.c.l.b16 %v178
      %v323 = vunpack.c.l.b16 %v179
      %v324 = vunpack.c.l.b16 %v180
      %v325 = vunpack.c.l.b16 %v181
      %v326 = vunpack.c.l.b16 %v182
      %v327 = vunpack.c.l.b16 %v183
      %v328 = vunpack.c.l.b16 %v184
      %v329 = vunpack.c.l.b16 %v185
      %v330 = vunpack.c.l.b16 %v186
      %v331 = vunpack.c.l.b16 %v187
      %v332 = vunpack.c.l.b16 %v188
      %v333 = vunpack.c.l.b16 %v189
      %v334 = vunpack.c.l.b16 %v190
      %v335 = vunpack.c.l.b16 %v191
      %v336 = vunpack.c.l.b16 %v192
      %v337 = vunpack.c.l.b16 %v193
      %v338 = vunpack.c.l.b16 %v194
      %v339 = vunpack.c.l.b16 %v195
      %v340 = vunpack.c.l.b16 %v196
      %v341 = vunpack.c.l.b16 %v197
      %v342 = vunpack.c.l.b16 %v198
      %v343 = vpack.c.b16 %v312, %v311
      %v344 = vpack.c.b16 %v314, %v313
      %v345 = vpack.c.b16 %v316, %v315
      %v346 = vpack.c.b16 %v318, %v317
      %v347 = vpack.c.b16 %v320, %v319
      %v348 = vpack.c.b16 %v322, %v321
      %v349 = vpack.c.b16 %v324, %v323
      %v350 = vpack.c.b16 %v326, %v325
      %v351 = vpack.c.b16 %v328, %v327
      %v352 = vpack.c.b16 %v330, %v329
      %v353 = vpack.c.b16 %v332, %v331
      %v354 = vpack.c.b16 %v334, %v333
      %v355 = vpack.c.b16 %v336, %v335
      %v356 = vpack.c.b16 %v338, %v337
      %v357 = vpack.c.b16 %v340, %v339
      %v358 = vpack.c.b16 %v342, %v341
      %375 = vmatprep.subr.bf16.mxu0 0
      %376 = vmatpush1.bf16.msra.mxu0 %v343
      %377 = vmatprep.subr.bf16.mxu0 0
      %378 = vmatpush1.bf16.msra.mxu0 %v344
      %379 = vmatprep.subr.bf16.mxu0 0
      %380 = vmatpush1.bf16.msra.mxu0 %v345
      %381 = vmatprep.subr.bf16.mxu0 0
      %382 = vmatpush1.bf16.msra.mxu0 %v346
      %383 = vmatprep.subr.bf16.mxu0 0
      %384 = vmatpush1.bf16.msra.mxu0 %v347
      %385 = vmatprep.subr.bf16.mxu0 0
      %386 = vmatpush1.bf16.msra.mxu0 %v348
      %387 = vmatprep.subr.bf16.mxu0 0
      %388 = vmatpush1.bf16.msra.mxu0 %v349
      %389 = vmatprep.subr.bf16.mxu0 0
      %390 = vmatpush1.bf16.msra.mxu0 %v350
      %391 = vmatprep.subr.bf16.mxu0 0
      %392 = vmatpush1.bf16.msra.mxu0 %v351
      %393 = vmatprep.subr.bf16.mxu0 0
      %394 = vmatpush1.bf16.msra.mxu0 %v352
      %395 = vmatprep.subr.bf16.mxu0 0
      %396 = vmatpush1.bf16.msra.mxu0 %v353
      %397 = vmatprep.subr.bf16.mxu0 0
      %398 = vmatpush1.bf16.msra.mxu0 %v354
      %399 = vmatprep.subr.bf16.mxu0 0
      %400 = vmatpush1.bf16.msra.mxu0 %v355
      %401 = vmatprep.subr.bf16.mxu0 0
      %402 = vmatpush1.bf16.msra.mxu0 %v356
      %403 = vmatprep.subr.bf16.mxu0 0
      %404 = vmatpush1.bf16.msra.mxu0 %v357
      %405 = vmatprep.subr.bf16.mxu0 0
      %406 = vmatpush1.bf16.msra.mxu0 %v358
      %407 = vmatprep.mubr.bf16.mxu0 %v248
      %408 = vmatmul.mubr.bf16.gmra.mrb[0].mxu0 %v247
      %v409 = vpop.f32.mrb[0].mxu0
      %v410 = vadd.f32 0.0, %v409
      %v411 = vpop.f32.mrb[0].mxu0
      %v412 = vpop.f32.mrb[0].mxu0
      %v413 = vadd.f32 0.0, %v412
      %v414 = vpop.f32.mrb[0].mxu0
      %415 = vmatprep.mubr.bf16.mxu0 %v250
      %416 = vmatmul.mubr.bf16.gmra.mrb[0].mxu0 %v249
      %v417 = vpop.f32.mrb[0].mxu0
      %v418 = vadd.f32 0.0, %v417
      %v419 = vpop.f32.mrb[0].mxu0
      %v420 = vpop.f32.mrb[0].mxu0
      %v421 = vadd.f32 0.0, %v420
      %v422 = vpop.f32.mrb[0].mxu0
      %423 = vmatprep.mubr.bf16.mxu0 %v252
      %424 = vmatmul.mubr.bf16.gmra.mrb[0].mxu0 %v251
      %v425 = vpop.f32.mrb[0].mxu0
      %v426 = vadd.f32 0.0, %v425
      %v427 = vpop.f32.mrb[0].mxu0
      %v428 = vpop.f32.mrb[0].mxu0
      %v429 = vadd.f32 0.0, %v428
      %v430 = vpop.f32.mrb[0].mxu0
      %431 = vmatprep.mubr.bf16.mxu0 %v254
      %432 = vmatmul.mubr.bf16.gmra.mrb[0].mxu0 %v253
      %v433 = vpop.f32.mrb[0].mxu0
      %v434 = vadd.f32 0.0, %v433
      %v435 = vpop.f32.mrb[0].mxu0
      %v436 = vpop.f32.mrb[0].mxu0
      %v437 = vadd.f32 0.0, %v436
      %v438 = vpop.f32.mrb[0].mxu0
      %439 = vmatprep.mubr.bf16.mxu0 %v256
      %440 = vmatmul.mubr.bf16.gmra.mrb[0].mxu0 %v255
      %v441 = vpop.f32.mrb[0].mxu0
      %v442 = vadd.f32 0.0, %v441
      %v443 = vpop.f32.mrb[0].mxu0
      %v444 = vpop.f32.mrb[0].mxu0
      %v445 = vadd.f32 0.0, %v444
      %v446 = vpop.f32.mrb[0].mxu0
      %447 = vmatprep.mubr.bf16.mxu0 %v258
      %448 = vmatmul.mubr.bf16.gmra.mrb[0].mxu0 %v257
      %v449 = vpop.f32.mrb[0].mxu0
      %v450 = vadd.f32 0.0, %v449
      %v451 = vpop.f32.mrb[0].mxu0
      %v452 = vpop.f32.mrb[0].mxu0
      %v453 = vadd.f32 0.0, %v452
      %v454 = vpop.f32.mrb[0].mxu0
      %455 = vmatprep.mubr.bf16.mxu0 %v260
      %456 = vmatmul.mubr.bf16.gmra.mrb[0].mxu0 %v259
      %v457 = vpop.f32.mrb[0].mxu0
      %v458 = vadd.f32 0.0, %v457
      %v459 = vpop.f32.mrb[0].mxu0
      %v460 = vpop.f32.mrb[0].mxu0
      %v461 = vadd.f32 0.0, %v460
      %v462 = vpop.f32.mrb[0].mxu0
      %463 = vmatprep.mubr.bf16.mxu0 %v262
      %464 = vmatmul.mubr.bf16.gmra.mrb[0].mxu0 %v261
      %v465 = vpop.f32.mrb[0].mxu0
      %v466 = vadd.f32 0.0, %v465
      %v467 = vpop.f32.mrb[0].mxu0
      %v468 = vpop.f32.mrb[0].mxu0
      %v469 = vadd.f32 0.0, %v468
      %v470 = vpop.f32.mrb[0].mxu0
      %471 = vdwg.mxu0
      %v472 = vpack.c.bf16 %v413, %v410
      %v473 = vpack.c.bf16 %v421, %v418
      %v474 = vpack.c.bf16 %v429, %v426
      %v475 = vpack.c.bf16 %v437, %v434
      %v476 = vpack.c.bf16 %v445, %v442
      %v477 = vpack.c.bf16 %v453, %v450
      %v478 = vpack.c.bf16 %v461, %v458
      %v479 = vpack.c.bf16 %v469, %v466
      %v488 = vunpack.c.l.b16 %v472
      %v489 = vunpack.c.h.b16 %v472
      %v490 = vunpack.c.l.b16 %v473
      %v491 = vunpack.c.h.b16 %v473
      %v492 = vunpack.c.l.b16 %v474
      %v493 = vunpack.c.h.b16 %v474
      %v494 = vunpack.c.l.b16 %v475
      %v495 = vunpack.c.h.b16 %v475
      %v496 = vunpack.c.l.b16 %v476
      %v497 = vunpack.c.h.b16 %v476
      %v498 = vunpack.c.l.b16 %v477
      %v499 = vunpack.c.h.b16 %v477
      %v500 = vunpack.c.l.b16 %v478
      %v501 = vunpack.c.h.b16 %v478
      %v502 = vunpack.c.l.b16 %v479
      %v503 = vunpack.c.h.b16 %v479
      %v504 = vpack.c.b16 %v488, %v488
      %v505 = vpack.c.b16 %v489, %v489
      %v506 = vpack.c.b16 %v490, %v490
      %v507 = vpack.c.b16 %v491, %v491
      %v508 = vpack.c.b16 %v492, %v492
      %v509 = vpack.c.b16 %v493, %v493
      %v510 = vpack.c.b16 %v494, %v494
      %v511 = vpack.c.b16 %v495, %v495
      %v512 = vpack.c.b16 %v496, %v496
      %v513 = vpack.c.b16 %v497, %v497
      %v514 = vpack.c.b16 %v498, %v498
      %v515 = vpack.c.b16 %v499, %v499
      %v516 = vpack.c.b16 %v500, %v500
      %v517 = vpack.c.b16 %v501, %v501
      %v518 = vpack.c.b16 %v502, %v502
      %v519 = vpack.c.b16 %v503, %v503
      %536 = vst [vmem:[%s148] sm:$0xf] %v504
      %537 = vst [vmem:[%s148 + $0x4] sm:$0xf] %v505
      %538 = vst [vmem:[%s148 + $0x8] sm:$0xf] %v506
      %539 = vst [vmem:[%s148 + $0xc] sm:$0xf] %v507
      %540 = vst [vmem:[%s148 + $0x10] sm:$0xf] %v508
      %541 = vst [vmem:[%s148 + $0x14] sm:$0xf] %v509
      %542 = vst [vmem:[%s148 + $0x18] sm:$0xf] %v510
      %543 = vst [vmem:[%s148 + $0x1c] sm:$0xf] %v511
      %544 = vst [vmem:[%s148 + $0x20] sm:$0xf] %v512
      %545 = vst [vmem:[%s148 + $0x24] sm:$0xf] %v513
      %546 = vst [vmem:[%s148 + $0x28] sm:$0xf] %v514
      %547 = vst [vmem:[%s148 + $0x2c] sm:$0xf] %v515
      %548 = vst [vmem:[%s148 + $0x30] sm:$0xf] %v516
      %549 = vst [vmem:[%s148 + $0x34] sm:$0xf] %v517
      %550 = vst [vmem:[%s148 + $0x38] sm:$0xf] %v518
      %551 = vst [vmem:[%s148 + $0x3c] sm:$0xf] %v519
      %s552 = smul.u32 16, %s13
      %p553 = scmp.lt.s32.totalorder %s552, 31
      %s554 = scalar_select %p553, %s552, 31
      %s555 = smul.addr %s554, 4
      %s556 = scalar_lea.vmem %s2, %s555
      // Predicated region
      $region29: #{gcn_forward.4} parent=27 // pred_check
        %p557 = pneg %p78
      $region30: #{gcn_forward.4} parent=27 // pred_check_branch
        %559 = sbr.rel (%p557) target = $region32
      $region31: #{gcn_forward.4} parent=27 // pred_region
        %s560 = smul.u32 16, %s13
      $region32: #{gcn_forward.4} parent=27 // pred_fallthru
        _
    $region28: #{gcn_forward.4} parent=5 // pred_fallthru
      _
    %p561 = scmp.le.s32.totalorder 2, %s8
    // Predicated region
    $region33: #{gcn_forward.4} parent=5 // pred_check
      %p562 = pneg %p561
    $region34: #{gcn_forward.4} parent=5 // pred_check_branch
      %564 = sbr.rel (%p562) target = $region36
    $region35: #{gcn_forward.4} parent=5 // pred_region
      %s565 = ssub.s32 %s8, 2
      // Predicated region
      $region37: #{gcn_forward.4} parent=35 // pred_check
        %p566 = pneg %p84
      $region38: #{gcn_forward.4} parent=35 // pred_check_branch
        %568 = sbr.rel (%p566) target = $region40
      $region39: #{gcn_forward.4} parent=35 // pred_region
        %s569 = smul.u32 16, %s14
        %p570 = scmp.lt.s32.totalorder %s569, 31
        %s571 = scalar_select %p570, %s569, 31
        %s572 = smul.addr %s571, 4
        %s573 = scalar_lea.vmem %s2, %s572
      $region40: #{gcn_forward.4} parent=35 // pred_fallthru
        _
    $region36: #{gcn_forward.4} parent=5 // pred_fallthru
      _
  $region6: #{gcn_forward.4} parent=0 // loop_footer
    %s12 = sadd.s32 1, %s8
  $region7: #{gcn_forward.4} parent=0 // loop_footer_branch
    %7 = sbr.rel target = $region3
  $region8: #{gcn_forward.4} parent=0 // loop_exit
    _

// kernel: gcn_forward.3
$region0: #{gcn_forward.3}
  #allocation0 [shape = 'u32[]', space=smem, size = 0x4, offset = 0x4, fixed_abs, tag = 'smem constant byte address 0x4 - core index']
  #allocation1 [shape = 'u32[144,128]{1,0:T(1,128)}', space=vmem, size = 0x12000, scoped, tag = 'internal scratch']
  #allocation2 [shape = 'f32[128,128]{1,0:T(8,128)}', space=vmem, size = 0x10000, scoped, tag = 'scratch operand']
  %s0 = inlined_call_operand.vmem [shape: s8[256,256], index: 0, kind: input, shape index: {}]
  %s1 = inlined_call_operand.vmem [shape: bf16[256,128], index: 1, kind: input, shape index: {}]
  %s2 = inlined_call_operand.vmem [shape: bf16[128,256], index: 2, kind: input, shape index: {}]
  %s3 = inlined_call_operand.vmem [shape: f32[1,256], index: 3, kind: input, shape index: {}]
  %s4 = inlined_call_operand.vmem [shape: bf16[256,256], index: 4, kind: output, shape index: {}]
  %s5 = sld [smem:[#allocation0]]
  $region57: #{gcn_forward.3} parent=0
    _
  %s7 = ssub.s32 1, %s5
  %s8 = scalar_select 0, %s7, %s5
  loop: start=0, step=1, limit=4
  $region2: #{gcn_forward.3} parent=0 // loop_pre_header
    _
  $region3: #{gcn_forward.3} parent=0 // loop_header
    %s10 = sphi 0, %s14
    %p11 = scmp.ge.s32.totalorder %s10, 4
    %s17 = sphi 0, %s29
    %s18 = sphi 0, %s25
    %s19 = sphi 0, %s17
    %s20 = sphi 0, %s18
    %s21 = sphi 0, %s19
    %s22 = sphi 0, %s20
    %s34 = sphi 0, %s36
    %s37 = sphi 0, %s34
    %s38 = sphi 0, %s37
    %s54 = sphi 0, %s38
    %s58 = sphi 0, %s58
    %s60 = sphi 0, %s58
    %s61 = sphi 0, %s60
    %s75 = sphi 0, %s61
    %s79 = sphi 0, %s79
    %s81 = sphi 0, %s79
    %s82 = sphi 0, %s81
    %s96 = sphi 0, %s82
    %s100 = sphi 0, %s100
    %s102 = sphi 0, %s100
    %s103 = sphi 0, %s102
    %s117 = sphi 0, %s103
    %s123 = sphi 0, %s125
    %s126 = sphi 0, %s123
    %s127 = sphi 0, %s126
    %s143 = sphi 0, %s127
  $region4: #{gcn_forward.3} parent=0 // loop_header_branch
    %13 = sbr.rel (%p11) target = $region8
  $region5: #{gcn_forward.3} parent=0 // loop_body
    %s15 = ssub.s32 %s10, 1
    %s16 = ssub.s32 %s10, 2
    %s23 = sadd.s32 1, %s18
    %p24 = scmp.ge.s32.totalorder %s23, 1
    %s25 = scalar_select %p24, 0, %s23
    %s26 = sadd.s32 1, %s17
    %s27 = scalar_select %p24, %s26, %s17
    %p28 = scmp.ge.s32.totalorder %s27, 2
    %s29 = scalar_select %p28, 0, %s27
    %s30 = ssub.s32 %s17, %s29
    %s31 = ssub.s32 %s18, %s25
    %s32 = sor.u32 %s30, %s31
    %p33 = scmp.eq.s32.totalorder %s32, 0
    %s35 = sadd.s32 %s34, 1
    %s36 = scalar_select %p33, %s34, %s35
    %p39 = pneg %p33
    %p40 = scmp.eq.s32.totalorder %s10, 1
    %p41 = por %p39, %p40
    %p42 = scmp.ne.s32.totalorder %s34, %s37
    %p43 = scmp.eq.s32.totalorder %s10, 0
    %p44 = por %p42, %p43
    %p45 = scmp.ne.s32.totalorder %s34, %s37
    %p46 = scmp.eq.s32.totalorder %s15, 1
    %p47 = por %p45, %p46
    %p48 = scmp.ne.s32.totalorder %s37, %s38
    %p49 = scmp.eq.s32.totalorder %s15, 0
    %p50 = por %p48, %p49
    %p51 = scmp.ne.s32.totalorder %s37, %s38
    %p52 = scmp.eq.s32.totalorder %s16, 1
    %p53 = por %p51, %p52
    %p55 = scmp.ne.s32.totalorder %s38, %s54
    %p56 = scmp.eq.s32.totalorder %s16, 0
    %p57 = por %p55, %p56
    %s59 = sadd.s32 %s58, 1
    %p62 = scmp.eq.s32.totalorder %s10, 1
    %p63 = scmp.ne.s32.totalorder %s58, %s60
    %p64 = scmp.eq.s32.totalorder %s10, 0
    %p65 = por %p63, %p64
    %p66 = scmp.ne.s32.totalorder %s58, %s60
    %p67 = scmp.eq.s32.totalorder %s15, 1
    %p68 = por %p66, %p67
    %p69 = scmp.ne.s32.totalorder %s60, %s61
    %p70 = scmp.eq.s32.totalorder %s15, 0
    %p71 = por %p69, %p70
    %p72 = scmp.ne.s32.totalorder %s60, %s61
    %p73 = scmp.eq.s32.totalorder %s16, 1
    %p74 = por %p72, %p73
    %p76 = scmp.ne.s32.totalorder %s61, %s75
    %p77 = scmp.eq.s32.totalorder %s16, 0
    %p78 = por %p76, %p77
    %s80 = sadd.s32 %s79, 1
    %p83 = scmp.eq.s32.totalorder %s10, 1
    %p84 = scmp.ne.s32.totalorder %s79, %s81
    %p85 = scmp.eq.s32.totalorder %s10, 0
    %p86 = por %p84, %p85
    %p87 = scmp.ne.s32.totalorder %s79, %s81
    %p88 = scmp.eq.s32.totalorder %s15, 1
    %p89 = por %p87, %p88
    %p90 = scmp.ne.s32.totalorder %s81, %s82
    %p91 = scmp.eq.s32.totalorder %s15, 0
    %p92 = por %p90, %p91
    %p93 = scmp.ne.s32.totalorder %s81, %s82
    %p94 = scmp.eq.s32.totalorder %s16, 1
    %p95 = por %p93, %p94
    %p97 = scmp.ne.s32.totalorder %s82, %s96
    %p98 = scmp.eq.s32.totalorder %s16, 0
    %p99 = por %p97, %p98
    %s101 = sadd.s32 %s100, 1
    %p104 = scmp.eq.s32.totalorder %s10, 1
    %p105 = scmp.ne.s32.totalorder %s100, %s102
    %p106 = scmp.eq.s32.totalorder %s10, 0
    %p107 = por %p105, %p106
    %p108 = scmp.ne.s32.totalorder %s100, %s102
    %p109 = scmp.eq.s32.totalorder %s15, 1
    %p110 = por %p108, %p109
    %p111 = scmp.ne.s32.totalorder %s102, %s103
    %p112 = scmp.eq.s32.totalorder %s15, 0
    %p113 = por %p111, %p112
    %p114 = scmp.ne.s32.totalorder %s102, %s103
    %p115 = scmp.eq.s32.totalorder %s16, 1
    %p116 = por %p114, %p115
    %p118 = scmp.ne.s32.totalorder %s103, %s117
    %p119 = scmp.eq.s32.totalorder %s16, 0
    %p120 = por %p118, %p119
    %s121 = ssub.s32 %s17, %s29
    %p122 = scmp.eq.s32.totalorder %s121, 0
    %s124 = sadd.s32 %s123, 1
    %s125 = scalar_select %p122, %s123, %s124
    %p128 = pneg %p122
    %p129 = scmp.eq.s32.totalorder %s10, 1
    %p130 = por %p128, %p129
    %p131 = scmp.ne.s32.totalorder %s123, %s126
    %p132 = scmp.eq.s32.totalorder %s10, 0
    %p133 = por %p131, %p132
    %p134 = scmp.ne.s32.totalorder %s123, %s126
    %p135 = scmp.eq.s32.totalorder %s15, 1
    %p136 = por %p134, %p135
    %p137 = scmp.ne.s32.totalorder %s126, %s127
    %p138 = scmp.eq.s32.totalorder %s15, 0
    %p139 = por %p137, %p138
    %p140 = scmp.ne.s32.totalorder %s126, %s127
    %p141 = scmp.eq.s32.totalorder %s16, 1
    %p142 = por %p140, %p141
    %p144 = scmp.ne.s32.totalorder %s127, %s143
    %p145 = scmp.eq.s32.totalorder %s16, 0
    %p146 = por %p144, %p145
    %p147 = scmp.le.s32.totalorder 1, %s10
    %p148 = scmp.lt.s32.totalorder %s10, 3
    %p149 = pnand %p147, %p148
    %p150 = pneg %p149
    // Predicated region
    $region9: #{gcn_forward.3} parent=5 // pred_check
      _
    $region10: #{gcn_forward.3} parent=5 // pred_check_branch
      %152 = sbr.rel (%p149) target = $region12
    $region11: #{gcn_forward.3} parent=5 // pred_region
      %s153 = ssub.s32 %s10, 1
      // Predicated region
      $region13: #{gcn_forward.3} parent=11 // pred_check
        %p154 = pneg %p71
      $region14: #{gcn_forward.3} parent=11 // pred_check_branch
        %156 = sbr.rel (%p154) target = $region16
      $region15: #{gcn_forward.3} parent=11 // pred_region
        _
      $region16: #{gcn_forward.3} parent=11 // pred_fallthru
        _
      // Predicated region
      $region17: #{gcn_forward.3} parent=11 // pred_check
        %p157 = pneg %p92
      $region18: #{gcn_forward.3} parent=11 // pred_check_branch
        %159 = sbr.rel (%p157) target = $region20
      $region19: #{gcn_forward.3} parent=11 // pred_region
        _
      $region20: #{gcn_forward.3} parent=11 // pred_fallthru
        _
      // Predicated region
      $region21: #{gcn_forward.3} parent=11 // pred_check
        %p160 = pneg %p113
      $region22: #{gcn_forward.3} parent=11 // pred_check_branch
        %162 = sbr.rel (%p160) target = $region24
      $region23: #{gcn_forward.3} parent=11 // pred_region
        _
      $region24: #{gcn_forward.3} parent=11 // pred_fallthru
        _
    $region12: #{gcn_forward.3} parent=5 // pred_fallthru
      _
    %p163 = scmp.lt.s32.totalorder %s10, 2
    // Predicated region
    $region25: #{gcn_forward.3} parent=5 // pred_check
      %p164 = pneg %p163
    $region26: #{gcn_forward.3} parent=5 // pred_check_branch
      %166 = sbr.rel (%p164) target = $region28
    $region27: #{gcn_forward.3} parent=5 // pred_region
      // Predicated region
      $region29: #{gcn_forward.3} parent=27 // pred_check
        %p167 = pneg %p44
      $region30: #{gcn_forward.3} parent=27 // pred_check_branch
        %169 = sbr.rel (%p167) target = $region32
      $region31: #{gcn_forward.3} parent=27 // pred_region
        %s170 = smul.u32 4, %s17
        %s171 = smul.u32 2, %s18
        %p172 = scmp.lt.s32.totalorder %s170, 7
        %s173 = scalar_select %p172, %s170, 7
        %p174 = scmp.lt.s32.totalorder %s171, 1
        %s175 = scalar_select %p174, %s171, 1
        %s176 = smul.addr %s173, 2
        %s177 = sadd.s32 %s175, %s176
        %s178 = smul.addr %s177, 8
        %s179 = scalar_lea.vmem %s0, %s178
        %s180 = smul.u32 4, %s17
        %s181 = smul.u32 2, %s18
      $region32: #{gcn_forward.3} parent=27 // pred_fallthru
        _
    $region28: #{gcn_forward.3} parent=5 // pred_fallthru
      _
    %p182 = scmp.le.s32.totalorder 1, %s10
    %p183 = scmp.lt.s32.totalorder %s10, 3
    %p184 = pnand %p182, %p183
    %p185 = pneg %p184
    // Predicated region
    $region33: #{gcn_forward.3} parent=5 // pred_check
      _
    $region34: #{gcn_forward.3} parent=5 // pred_check_branch
      %187 = sbr.rel (%p184) target = $region36
    $region35: #{gcn_forward.3} parent=5 // pred_region
      %s188 = ssub.s32 %s10, 1
      %s189 = smul.u32 4, %s19
      %s190 = smul.u32 2, %s20
      %p191 = scmp.lt.s32.totalorder %s189, 7
      %s192 = scalar_select %p191, %s189, 7
      %p193 = scmp.lt.s32.totalorder %s190, 1
      %s194 = scalar_select %p193, %s190, 1
      %s195 = smul.addr %s192, 2
      %s196 = sadd.s32 %s194, %s195
      %s197 = smul.addr %s196, 8
      %s198 = scalar_lea.vmem %s0, %s197
      %p199 = pneg %p50
      %p200 = pneg %p47
      %p201 = pneg %p71
      %p202 = pneg %p68
      %p203 = pneg %p92
      %p204 = pneg %p89
      %p205 = pneg %p113
      %p206 = pneg %p110
      %p207 = pneg %p139
      %p208 = pneg %p136
      %s209 = smul.u32 16, %s19
      %p210 = scmp.lt.s32.totalorder %s209, 31
      %s211 = scalar_select %p210, %s209, 31
      %s212 = smul.addr %s211, 2
      %s213 = smul.addr %s212, 4
      %s214 = scalar_lea.vmem %s4, %s213
      %s215 = smul.u32 4, %s19
      %s216 = smul.u32 2, %s20
      %p217 = scmp.lt.s32.totalorder %s215, 7
      %s218 = scalar_select %p217, %s215, 7
      %p219 = scmp.lt.s32.totalorder %s216, 1
      %s220 = scalar_select %p219, %s216, 1
      %s221 = smul.addr %s218, 2
      %s222 = sadd.s32 %s220, %s221
      %s223 = smul.addr %s222, 8
      %s224 = scalar_lea.vmem %s0, %s223
      %s225 = smul.u32 4, %s19
      %s226 = smul.u32 2, %s20
      %s227 = smul.u32 16, %s19
      %p228 = scmp.lt.s32.totalorder %s227, 31
      %s229 = scalar_select %p228, %s227, 31
      %s230 = smul.addr %s229, 2
      %s231 = smul.addr %s230, 4
      %s232 = scalar_lea.vmem %s4, %s231
      %s233 = smul.u32 16, %s19
      %p235 = scmp.eq.s32.totalorder %s20, 0
      // Predicated region
      $region37: #{gcn_forward.3} parent=35 // pred_check
        %p236 = pneg %p235
      $region38: #{gcn_forward.3} parent=35 // pred_check_branch
        %238 = sbr.rel (%p236) target = $region40
      $region39: #{gcn_forward.3} parent=35 // pred_region
        %239 = vst [vmem:[#allocation2] sm:$0xff] 0.0
        %240 = vst [vmem:[#allocation2 + $0x8] sm:$0xff] 0.0
        %241 = vst [vmem:[#allocation2 + $0x10] sm:$0xff] 0.0
        %242 = vst [vmem:[#allocation2 + $0x18] sm:$0xff] 0.0
        %243 = vst [vmem:[#allocation2 + $0x20] sm:$0xff] 0.0
        %244 = vst [vmem:[#allocation2 + $0x28] sm:$0xff] 0.0
        %245 = vst [vmem:[#allocation2 + $0x30] sm:$0xff] 0.0
        %246 = vst [vmem:[#allocation2 + $0x38] sm:$0xff] 0.0
        %247 = vst [vmem:[#allocation2 + $0x40] sm:$0xff] 0.0
        %248 = vst [vmem:[#allocation2 + $0x48] sm:$0xff] 0.0
        %249 = vst [vmem:[#allocation2 + $0x50] sm:$0xff] 0.0
        %250 = vst [vmem:[#allocation2 + $0x58] sm:$0xff] 0.0
        %251 = vst [vmem:[#allocation2 + $0x60] sm:$0xff] 0.0
        %252 = vst [vmem:[#allocation2 + $0x68] sm:$0xff] 0.0
        %253 = vst [vmem:[#allocation2 + $0x70] sm:$0xff] 0.0
        %254 = vst [vmem:[#allocation2 + $0x78] sm:$0xff] 0.0
      $region40: #{gcn_forward.3} parent=35 // pred_fallthru
        _
      %s255 = smul.u32 %s20, 256
      %s256 = sshra.s32 %s255, 3
      %s257 = sand.u32 %s255, 7
      %s258 = smul.addr %s256, 4
      %s259 = scalar_lea.vmem %s1, %s258
      %v260 = vld [vmem:[%s259] sm:$0xf]
      %v261 = vld [vmem:[%s259 + $0x4] sm:$0xf]
      %v262 = vld [vmem:[%s259 + $0x8] sm:$0xf]
      %v263 = vld [vmem:[%s259 + $0xc] sm:$0xf]
      %v264 = vld [vmem:[%s259 + $0x10] sm:$0xf]
      %v265 = vld [vmem:[%s259 + $0x14] sm:$0xf]
      %v266 = vld [vmem:[%s259 + $0x18] sm:$0xf]
      %v267 = vld [vmem:[%s259 + $0x1c] sm:$0xf]
      %v268 = vld [vmem:[%s259 + $0x20] sm:$0xf]
      %v269 = vld [vmem:[%s259 + $0x24] sm:$0xf]
      %v270 = vld [vmem:[%s259 + $0x28] sm:$0xf]
      %v271 = vld [vmem:[%s259 + $0x2c] sm:$0xf]
      %v272 = vld [vmem:[%s259 + $0x30] sm:$0xf]
      %v273 = vld [vmem:[%s259 + $0x34] sm:$0xf]
      %v274 = vld [vmem:[%s259 + $0x38] sm:$0xf]
      %v275 = vld [vmem:[%s259 + $0x3c] sm:$0xf]
      %v276 = vld [vmem:[%s259 + $0x40] sm:$0xf]
      %v277 = vld [vmem:[%s259 + $0x44] sm:$0xf]
      %v278 = vld [vmem:[%s259 + $0x48] sm:$0xf]
      %v279 = vld [vmem:[%s259 + $0x4c] sm:$0xf]
      %v280 = vld [vmem:[%s259 + $0x50] sm:$0xf]
      %v281 = vld [vmem:[%s259 + $0x54] sm:$0xf]
      %v282 = vld [vmem:[%s259 + $0x58] sm:$0xf]
      %v283 = vld [vmem:[%s259 + $0x5c] sm:$0xf]
      %v284 = vld [vmem:[%s259 + $0x60] sm:$0xf]
      %v285 = vld [vmem:[%s259 + $0x64] sm:$0xf]
      %v286 = vld [vmem:[%s259 + $0x68] sm:$0xf]
      %v287 = vld [vmem:[%s259 + $0x6c] sm:$0xf]
      %v288 = vld [vmem:[%s259 + $0x70] sm:$0xf]
      %v289 = vld [vmem:[%s259 + $0x74] sm:$0xf]
      %v290 = vld [vmem:[%s259 + $0x78] sm:$0xf]
      %v291 = vld [vmem:[%s259 + $0x7c] sm:$0xf]
      %v292 = vld [vmem:[%s224] sm:$0xff]
      %v293 = vld [vmem:[%s224 + $0x8] sm:$0xff]
      %v294 = vld [vmem:[%s224 + $0x10] sm:$0xff]
      %v295 = vld [vmem:[%s224 + $0x18] sm:$0xff]
      %v296 = vld [vmem:[%s224 + $0x20] sm:$0xff]
      %v297 = vld [vmem:[%s224 + $0x28] sm:$0xff]
      %v298 = vld [vmem:[%s224 + $0x30] sm:$0xff]
      %v299 = vld [vmem:[%s224 + $0x38] sm:$0xff]
      %v300 = vunpack.c.l.s8.bf16 %v292
      %v301 = vunpack.c.l.s8.bf16 %v293
      %v302 = vunpack.c.h.s8.bf16 %v292
      %v303 = vunpack.c.h.s8.bf16 %v293
      %v304 = vunpack.c.l.s8.bf16 %v294
      %v305 = vunpack.c.l.s8.bf16 %v295
      %v306 = vunpack.c.h.s8.bf16 %v294
      %v307 = vunpack.c.h.s8.bf16 %v295
      %v308 = vunpack.c.l.s8.bf16 %v296
      %v309 = vunpack.c.l.s8.bf16 %v297
      %v310 = vunpack.c.h.s8.bf16 %v296
      %v311 = vunpack.c.h.s8.bf16 %v297
      %v312 = vunpack.c.l.s8.bf16 %v298
      %v313 = vunpack.c.l.s8.bf16 %v299
      %v314 = vunpack.c.h.s8.bf16 %v298
      %v315 = vunpack.c.h.s8.bf16 %v299
      %v316 = vld [vmem:[#allocation2] sm:$0xff]
      %v317 = vld [vmem:[#allocation2 + $0x8] sm:$0xff]
      %v318 = vld [vmem:[#allocation2 + $0x10] sm:$0xff]
      %v319 = vld [vmem:[#allocation2 + $0x18] sm:$0xff]
      %v320 = vld [vmem:[#allocation2 + $0x20] sm:$0xff]
      %v321 = vld [vmem:[#allocation2 + $0x28] sm:$0xff]
      %v322 = vld [vmem:[#allocation2 + $0x30] sm:$0xff]
      %v323 = vld [vmem:[#allocation2 + $0x38] sm:$0xff]
      %v324 = vld [vmem:[#allocation2 + $0x40] sm:$0xff]
      %v325 = vld [vmem:[#allocation2 + $0x48] sm:$0xff]
      %v326 = vld [vmem:[#allocation2 + $0x50] sm:$0xff]
      %v327 = vld [vmem:[#allocation2 + $0x58] sm:$0xff]
      %v328 = vld [vmem:[#allocation2 + $0x60] sm:$0xff]
      %v329 = vld [vmem:[#allocation2 + $0x68] sm:$0xff]
      %v330 = vld [vmem:[#allocation2 + $0x70] sm:$0xff]
      %v331 = vld [vmem:[#allocation2 + $0x78] sm:$0xff]
      %v364 = vunpack.c.l.b16 %v260
      %v365 = vunpack.c.l.b16 %v261
      %v366 = vunpack.c.l.b16 %v262
      %v367 = vunpack.c.l.b16 %v263
      %v368 = vunpack.c.l.b16 %v264
      %v369 = vunpack.c.l.b16 %v265
      %v370 = vunpack.c.l.b16 %v266
      %v371 = vunpack.c.l.b16 %v267
      %v372 = vunpack.c.l.b16 %v268
      %v373 = vunpack.c.l.b16 %v269
      %v374 = vunpack.c.l.b16 %v270
      %v375 = vunpack.c.l.b16 %v271
      %v376 = vunpack.c.l.b16 %v272
      %v377 = vunpack.c.l.b16 %v273
      %v378 = vunpack.c.l.b16 %v274
      %v379 = vunpack.c.l.b16 %v275
      %v380 = vunpack.c.l.b16 %v276
      %v381 = vunpack.c.l.b16 %v277
      %v382 = vunpack.c.l.b16 %v278
      %v383 = vunpack.c.l.b16 %v279
      %v384 = vunpack.c.l.b16 %v280
      %v385 = vunpack.c.l.b16 %v281
      %v386 = vunpack.c.l.b16 %v282
      %v387 = vunpack.c.l.b16 %v283
      %v388 = vunpack.c.l.b16 %v284
      %v389 = vunpack.c.l.b16 %v285
      %v390 = vunpack.c.l.b16 %v286
      %v391 = vunpack.c.l.b16 %v287
      %v392 = vunpack.c.l.b16 %v288
      %v393 = vunpack.c.l.b16 %v289
      %v394 = vunpack.c.l.b16 %v290
      %v395 = vunpack.c.l.b16 %v291
      %v396 = vpack.c.b16 %v365, %v364
      %v397 = vpack.c.b16 %v367, %v366
      %v398 = vpack.c.b16 %v369, %v368
      %v399 = vpack.c.b16 %v371, %v370
      %v400 = vpack.c.b16 %v373, %v372
      %v401 = vpack.c.b16 %v375, %v374
      %v402 = vpack.c.b16 %v377, %v376
      %v403 = vpack.c.b16 %v379, %v378
      %v404 = vpack.c.b16 %v381, %v380
      %v405 = vpack.c.b16 %v383, %v382
      %v406 = vpack.c.b16 %v385, %v384
      %v407 = vpack.c.b16 %v387, %v386
      %v408 = vpack.c.b16 %v389, %v388
      %v409 = vpack.c.b16 %v391, %v390
      %v410 = vpack.c.b16 %v393, %v392
      %v411 = vpack.c.b16 %v395, %v394
      %428 = vmatprep.subr.bf16.mxu0 0
      %429 = vmatpush1.bf16.msra.mxu0 %v396
      %430 = vmatprep.subr.bf16.mxu0 0
      %431 = vmatpush1.bf16.msra.mxu0 %v397
      %432 = vmatprep.subr.bf16.mxu0 0
      %433 = vmatpush1.bf16.msra.mxu0 %v398
      %434 = vmatprep.subr.bf16.mxu0 0
      %435 = vmatpush1.bf16.msra.mxu0 %v399
      %436 = vmatprep.subr.bf16.mxu0 0
      %437 = vmatpush1.bf16.msra.mxu0 %v400
      %438 = vmatprep.subr.bf16.mxu0 0
      %439 = vmatpush1.bf16.msra.mxu0 %v401
      %440 = vmatprep.subr.bf16.mxu0 0
      %441 = vmatpush1.bf16.msra.mxu0 %v402
      %442 = vmatprep.subr.bf16.mxu0 0
      %443 = vmatpush1.bf16.msra.mxu0 %v403
      %444 = vmatprep.subr.bf16.mxu0 0
      %445 = vmatpush1.bf16.msra.mxu0 %v404
      %446 = vmatprep.subr.bf16.mxu0 0
      %447 = vmatpush1.bf16.msra.mxu0 %v405
      %448 = vmatprep.subr.bf16.mxu0 0
      %449 = vmatpush1.bf16.msra.mxu0 %v406
      %450 = vmatprep.subr.bf16.mxu0 0
      %451 = vmatpush1.bf16.msra.mxu0 %v407
      %452 = vmatprep.subr.bf16.mxu0 0
      %453 = vmatpush1.bf16.msra.mxu0 %v408
      %454 = vmatprep.subr.bf16.mxu0 0
      %455 = vmatpush1.bf16.msra.mxu0 %v409
      %456 = vmatprep.subr.bf16.mxu0 0
      %457 = vmatpush1.bf16.msra.mxu0 %v410
      %458 = vmatprep.subr.bf16.mxu0 0
      %459 = vmatpush1.bf16.msra.mxu0 %v411
      %460 = vmatprep.mubr.bf16.mxu0 %v301
      %461 = vmatmul.mubr.bf16.gmra.mrb[0].mxu0 %v300
      %v462 = vpop.f32.mrb[0].mxu0
      %v463 = vadd.f32 0.0, %v462
      %v464 = vpop.f32.mrb[0].mxu0
      %v465 = vpop.f32.mrb[0].mxu0
      %v466 = vadd.f32 0.0, %v465
      %v467 = vpop.f32.mrb[0].mxu0
      %468 = vmatprep.mubr.bf16.mxu0 %v303
      %469 = vmatmul.mubr.bf16.gmra.mrb[0].mxu0 %v302
      %v470 = vpop.f32.mrb[0].mxu0
      %v471 = vadd.f32 0.0, %v470
      %v472 = vpop.f32.mrb[0].mxu0
      %v473 = vpop.f32.mrb[0].mxu0
      %v474 = vadd.f32 0.0, %v473
      %v475 = vpop.f32.mrb[0].mxu0
      %476 = vmatprep.mubr.bf16.mxu0 %v305
      %477 = vmatmul.mubr.bf16.gmra.mrb[0].mxu0 %v304
      %v478 = vpop.f32.mrb[0].mxu0
      %v479 = vadd.f32 0.0, %v478
      %v480 = vpop.f32.mrb[0].mxu0
      %v481 = vpop.f32.mrb[0].mxu0
      %v482 = vadd.f32 0.0, %v481
      %v483 = vpop.f32.mrb[0].mxu0
      %484 = vmatprep.mubr.bf16.mxu0 %v307
      %485 = vmatmul.mubr.bf16.gmra.mrb[0].mxu0 %v306
      %v486 = vpop.f32.mrb[0].mxu0
      %v487 = vadd.f32 0.0, %v486
      %v488 = vpop.f32.mrb[0].mxu0
      %v489 = vpop.f32.mrb[0].mxu0
      %v490 = vadd.f32 0.0, %v489
      %v491 = vpop.f32.mrb[0].mxu0
      %492 = vmatprep.mubr.bf16.mxu0 %v309
      %493 = vmatmul.mubr.bf16.gmra.mrb[0].mxu0 %v308
      %v494 = vpop.f32.mrb[0].mxu0
      %v495 = vadd.f32 0.0, %v494
      %v496 = vpop.f32.mrb[0].mxu0
      %v497 = vpop.f32.mrb[0].mxu0
      %v498 = vadd.f32 0.0, %v497
      %v499 = vpop.f32.mrb[0].mxu0
      %500 = vmatprep.mubr.bf16.mxu0 %v311
      %501 = vmatmul.mubr.bf16.gmra.mrb[0].mxu0 %v310
      %v502 = vpop.f32.mrb[0].mxu0
      %v503 = vadd.f32 0.0, %v502
      %v504 = vpop.f32.mrb[0].mxu0
      %v505 = vpop.f32.mrb[0].mxu0
      %v506 = vadd.f32 0.0, %v505
      %v507 = vpop.f32.mrb[0].mxu0
      %508 = vmatprep.mubr.bf16.mxu0 %v313
      %509 = vmatmul.mubr.bf16.gmra.mrb[0].mxu0 %v312
      %v510 = vpop.f32.mrb[0].mxu0
      %v511 = vadd.f32 0.0, %v510
      %v512 = vpop.f32.mrb[0].mxu0
      %v513 = vpop.f32.mrb[0].mxu0
      %v514 = vadd.f32 0.0, %v513
      %v515 = vpop.f32.mrb[0].mxu0
      %516 = vmatprep.mubr.bf16.mxu0 %v315
      %517 = vmatmul.mubr.bf16.gmra.mrb[0].mxu0 %v314
      %v518 = vpop.f32.mrb[0].mxu0
      %v519 = vadd.f32 0.0, %v518
      %v520 = vpop.f32.mrb[0].mxu0
      %v521 = vpop.f32.mrb[0].mxu0
      %v522 = vadd.f32 0.0, %v521
      %v523 = vpop.f32.mrb[0].mxu0
      %524 = vdwg.mxu0
      %v525 = vadd.f32 %v316, %v463
      %v526 = vadd.f32 %v317, %v466
      %v527 = vadd.f32 %v318, %v471
      %v528 = vadd.f32 %v319, %v474
      %v529 = vadd.f32 %v320, %v479
      %v530 = vadd.f32 %v321, %v482
      %v531 = vadd.f32 %v322, %v487
      %v532 = vadd.f32 %v323, %v490
      %v533 = vadd.f32 %v324, %v495
      %v534 = vadd.f32 %v325, %v498
      %v535 = vadd.f32 %v326, %v503
      %v536 = vadd.f32 %v327, %v506
      %v537 = vadd.f32 %v328, %v511
      %v538 = vadd.f32 %v329, %v514
      %v539 = vadd.f32 %v330, %v519
      %v540 = vadd.f32 %v331, %v522
      %541 = vst [vmem:[#allocation2] sm:$0xff] %v525
      %542 = vst [vmem:[#allocation2 + $0x8] sm:$0xff] %v526
      %543 = vst [vmem:[#allocation2 + $0x10] sm:$0xff] %v527
      %544 = vst [vmem:[#allocation2 + $0x18] sm:$0xff] %v528
      %545 = vst [vmem:[#allocation2 + $0x20] sm:$0xff] %v529
      %546 = vst [vmem:[#allocation2 + $0x28] sm:$0xff] %v530
      %547 = vst [vmem:[#allocation2 + $0x30] sm:$0xff] %v531
      %548 = vst [vmem:[#allocation2 + $0x38] sm:$0xff] %v532
      %549 = vst [vmem:[#allocation2 + $0x40] sm:$0xff] %v533
      %550 = vst [vmem:[#allocation2 + $0x48] sm:$0xff] %v534
      %551 = vst [vmem:[#allocation2 + $0x50] sm:$0xff] %v535
      %552 = vst [vmem:[#allocation2 + $0x58] sm:$0xff] %v536
      %553 = vst [vmem:[#allocation2 + $0x60] sm:$0xff] %v537
      %554 = vst [vmem:[#allocation2 + $0x68] sm:$0xff] %v538
      %555 = vst [vmem:[#allocation2 + $0x70] sm:$0xff] %v539
      %556 = vst [vmem:[#allocation2 + $0x78] sm:$0xff] %v540
      // Predicated region
      $region41: #{gcn_forward.3} parent=35 // pred_check
        %p557 = pneg %p235
      $region42: #{gcn_forward.3} parent=35 // pred_check_branch
        %559 = sbr.rel (%p557) target = $region44
      $region43: #{gcn_forward.3} parent=35 // pred_region
        %v560 = vld [vmem:[#allocation2] sm:$0xff]
        %v561 = vld [vmem:[#allocation2 + $0x8] sm:$0xff]
        %v562 = vld [vmem:[#allocation2 + $0x10] sm:$0xff]
        %v563 = vld [vmem:[#allocation2 + $0x18] sm:$0xff]
        %v564 = vld [vmem:[#allocation2 + $0x20] sm:$0xff]
        %v565 = vld [vmem:[#allocation2 + $0x28] sm:$0xff]
        %v566 = vld [vmem:[#allocation2 + $0x30] sm:$0xff]
        %v567 = vld [vmem:[#allocation2 + $0x38] sm:$0xff]
        %v568 = vld [vmem:[#allocation2 + $0x40] sm:$0xff]
        %v569 = vld [vmem:[#allocation2 + $0x48] sm:$0xff]
        %v570 = vld [vmem:[#allocation2 + $0x50] sm:$0xff]
        %v571 = vld [vmem:[#allocation2 + $0x58] sm:$0xff]
        %v572 = vld [vmem:[#allocation2 + $0x60] sm:$0xff]
        %v573 = vld [vmem:[#allocation2 + $0x68] sm:$0xff]
        %v574 = vld [vmem:[#allocation2 + $0x70] sm:$0xff]
        %v575 = vld [vmem:[#allocation2 + $0x78] sm:$0xff]
        %v576 = vpack.c.bf16 %v561, %v560
        %v577 = vpack.c.bf16 %v563, %v562
        %v578 = vpack.c.bf16 %v565, %v564
        %v579 = vpack.c.bf16 %v567, %v566
        %v580 = vpack.c.bf16 %v569, %v568
        %v581 = vpack.c.bf16 %v571, %v570
        %v582 = vpack.c.bf16 %v573, %v572
        %v583 = vpack.c.bf16 %v575, %v574
        %v584 = vld [vmem:[%s2] sm:$0xff]
        %v585 = vld [vmem:[%s2 + $0x8] sm:$0xff]
        %v586 = vld [vmem:[%s2 + $0x10] sm:$0xff]
        %v587 = vld [vmem:[%s2 + $0x18] sm:$0xff]
        %v588 = vld [vmem:[%s2 + $0x20] sm:$0xff]
        %v589 = vld [vmem:[%s2 + $0x28] sm:$0xff]
        %v590 = vld [vmem:[%s2 + $0x30] sm:$0xff]
        %v591 = vld [vmem:[%s2 + $0x38] sm:$0xff]
        %v592 = vld [vmem:[%s2 + $0x40] sm:$0xff]
        %v593 = vld [vmem:[%s2 + $0x48] sm:$0xff]
        %v594 = vld [vmem:[%s2 + $0x50] sm:$0xff]
        %v595 = vld [vmem:[%s2 + $0x58] sm:$0xff]
        %v596 = vld [vmem:[%s2 + $0x60] sm:$0xff]
        %v597 = vld [vmem:[%s2 + $0x68] sm:$0xff]
        %v598 = vld [vmem:[%s2 + $0x70] sm:$0xff]
        %v599 = vld [vmem:[%s2 + $0x78] sm:$0xff]
        %v600 = vld [vmem:[%s3] sm:$0x3]
        %v602 = vlaneseq
        %v603 = vshrl.u32 %v602, 7
        %v604 = vsub.s32 0, %v603
        %v605 = vrot.slane %v600, %v604
        %v606 = vlaneseq
        %v607 = vshrl.u32 %v606, 7
        %v608 = vsub.s32 1, %v607
        %v609 = vrot.slane %v600, %v608
        %v628 = vunpack.c.l.b16 %v584
        %v629 = vunpack.c.h.b16 %v584
        %v630 = vunpack.c.l.b16 %v585
        %v631 = vunpack.c.h.b16 %v585
        %v632 = vunpack.c.l.b16 %v586
        %v633 = vunpack.c.h.b16 %v586
        %v634 = vunpack.c.l.b16 %v587
        %v635 = vunpack.c.h.b16 %v587
        %v636 = vunpack.c.l.b16 %v588
        %v637 = vunpack.c.h.b16 %v588
        %v638 = vunpack.c.l.b16 %v589
        %v639 = vunpack.c.h.b16 %v589
        %v640 = vunpack.c.l.b16 %v590
        %v641 = vunpack.c.h.b16 %v590
        %v642 = vunpack.c.l.b16 %v591
        %v643 = vunpack.c.h.b16 %v591
        %v644 = vunpack.c.l.b16 %v592
        %v645 = vunpack.c.h.b16 %v592
        %v646 = vunpack.c.l.b16 %v593
        %v647 = vunpack.c.h.b16 %v593
        %v648 = vunpack.c.l.b16 %v594
        %v649 = vunpack.c.h.b16 %v594
        %v650 = vunpack.c.l.b16 %v595
        %v651 = vunpack.c.h.b16 %v595
        %v652 = vunpack.c.l.b16 %v596
        %v653 = vunpack.c.h.b16 %v596
        %v654 = vunpack.c.l.b16 %v597
        %v655 = vunpack.c.h.b16 %v597
        %v656 = vunpack.c.l.b16 %v598
        %v657 = vunpack.c.h.b16 %v598
        %v658 = vunpack.c.l.b16 %v599
        %v659 = vunpack.c.h.b16 %v599
        %v660 = vpack.c.b16 %v630, %v628
        %v661 = vpack.c.b16 %v631, %v629
        %v662 = vpack.c.b16 %v634, %v632
        %v663 = vpack.c.b16 %v635, %v633
        %v664 = vpack.c.b16 %v638, %v636
        %v665 = vpack.c.b16 %v639, %v637
        %v666 = vpack.c.b16 %v642, %v640
        %v667 = vpack.c.b16 %v643, %v641
        %v668 = vpack.c.b16 %v646, %v644
        %v669 = vpack.c.b16 %v647, %v645
        %v670 = vpack.c.b16 %v650, %v648
        %v671 = vpack.c.b16 %v651, %v649
        %v672 = vpack.c.b16 %v654, %v652
        %v673 = vpack.c.b16 %v655, %v653
        %v674 = vpack.c.b16 %v658, %v656
        %v675 = vpack.c.b16 %v659, %v657
        %692 = vmatprep.subr.bf16.mxu0 %v661
        %693 = vmatpush1.bf16.msra.mxu0 %v660
        %694 = vmatprep.subr.bf16.mxu0 %v663
        %695 = vmatpush1.bf16.msra.mxu0 %v662
        %696 = vmatprep.subr.bf16.mxu0 %v665
        %697 = vmatpush1.bf16.msra.mxu0 %v664
        %698 = vmatprep.subr.bf16.mxu0 %v667
        %699 = vmatpush1.bf16.msra.mxu0 %v666
        %700 = vmatprep.subr.bf16.mxu0 %v669
        %701 = vmatpush1.bf16.msra.mxu0 %v668
        %702 = vmatprep.subr.bf16.mxu0 %v671
        %703 = vmatpush1.bf16.msra.mxu0 %v670
        %704 = vmatprep.subr.bf16.mxu0 %v673
        %705 = vmatpush1.bf16.msra.mxu0 %v672
        %706 = vmatprep.subr.bf16.mxu0 %v675
        %707 = vmatpush1.bf16.msra.mxu0 %v674
        %708 = vmatprep.subr.bf16.mxu0 0
        %709 = vmatpush1.bf16.msra.mxu0 0
        %710 = vmatprep.subr.bf16.mxu0 0
        %711 = vmatpush1.bf16.msra.mxu0 0
        %712 = vmatprep.subr.bf16.mxu0 0
        %713 = vmatpush1.bf16.msra.mxu0 0
        %714 = vmatprep.subr.bf16.mxu0 0
        %715 = vmatpush1.bf16.msra.mxu0 0
        %716 = vmatprep.subr.bf16.mxu0 0
        %717 = vmatpush1.bf16.msra.mxu0 0
        %718 = vmatprep.subr.bf16.mxu0 0
        %719 = vmatpush1.bf16.msra.mxu0 0
        %720 = vmatprep.subr.bf16.mxu0 0
        %721 = vmatpush1.bf16.msra.mxu0 0
        %722 = vmatprep.subr.bf16.mxu0 0
        %723 = vmatpush1.bf16.msra.mxu0 0
        %724 = vmatprep.mubr.bf16.mxu0 0
        %725 = vmatmul.mubr.bf16.gmra.mrb[0].mxu0 %v576
        %v726 = vpop.f32.mrb[0].mxu0
        %v727 = vadd.f32 %v605, %v726
        %v728 = vpop.f32.mrb[0].mxu0
        %v729 = vadd.f32 %v609, %v728
        %v730 = vpop.f32.mrb[0].mxu0
        %v731 = vadd.f32 %v605, %v730
        %v732 = vpop.f32.mrb[0].mxu0
        %v733 = vadd.f32 %v609, %v732
        %734 = vmatprep.mubr.bf16.mxu0 0
        %735 = vmatmul.mubr.bf16.gmra.mrb[0].mxu0 %v577
        %v736 = vpop.f32.mrb[0].mxu0
        %v737 = vadd.f32 %v605, %v736
        %v738 = vpop.f32.mrb[0].mxu0
        %v739 = vadd.f32 %v609, %v738
        %v740 = vpop.f32.mrb[0].mxu0
        %v741 = vadd.f32 %v605, %v740
        %v742 = vpop.f32.mrb[0].mxu0
        %v743 = vadd.f32 %v609, %v742
        %744 = vmatprep.mubr.bf16.mxu0 0
        %745 = vmatmul.mubr.bf16.gmra.mrb[0].mxu0 %v578
        %v746 = vpop.f32.mrb[0].mxu0
        %v747 = vadd.f32 %v605, %v746
        %v748 = vpop.f32.mrb[0].mxu0
        %v749 = vadd.f32 %v609, %v748
        %v750 = vpop.f32.mrb[0].mxu0
        %v751 = vadd.f32 %v605, %v750
        %v752 = vpop.f32.mrb[0].mxu0
        %v753 = vadd.f32 %v609, %v752
        %754 = vmatprep.mubr.bf16.mxu0 0
        %755 = vmatmul.mubr.bf16.gmra.mrb[0].mxu0 %v579
        %v756 = vpop.f32.mrb[0].mxu0
        %v757 = vadd.f32 %v605, %v756
        %v758 = vpop.f32.mrb[0].mxu0
        %v759 = vadd.f32 %v609, %v758
        %v760 = vpop.f32.mrb[0].mxu0
        %v761 = vadd.f32 %v605, %v760
        %v762 = vpop.f32.mrb[0].mxu0
        %v763 = vadd.f32 %v609, %v762
        %764 = vmatprep.mubr.bf16.mxu0 0
        %765 = vmatmul.mubr.bf16.gmra.mrb[0].mxu0 %v580
        %v766 = vpop.f32.mrb[0].mxu0
        %v767 = vadd.f32 %v605, %v766
        %v768 = vpop.f32.mrb[0].mxu0
        %v769 = vadd.f32 %v609, %v768
        %v770 = vpop.f32.mrb[0].mxu0
        %v771 = vadd.f32 %v605, %v770
        %v772 = vpop.f32.mrb[0].mxu0
        %v773 = vadd.f32 %v609, %v772
        %774 = vmatprep.mubr.bf16.mxu0 0
        %775 = vmatmul.mubr.bf16.gmra.mrb[0].mxu0 %v581
        %v776 = vpop.f32.mrb[0].mxu0
        %v777 = vadd.f32 %v605, %v776
        %v778 = vpop.f32.mrb[0].mxu0
        %v779 = vadd.f32 %v609, %v778
        %v780 = vpop.f32.mrb[0].mxu0
        %v781 = vadd.f32 %v605, %v780
        %v782 = vpop.f32.mrb[0].mxu0
        %v783 = vadd.f32 %v609, %v782
        %784 = vmatprep.mubr.bf16.mxu0 0
        %785 = vmatmul.mubr.bf16.gmra.mrb[0].mxu0 %v582
        %v786 = vpop.f32.mrb[0].mxu0
        %v787 = vadd.f32 %v605, %v786
        %v788 = vpop.f32.mrb[0].mxu0
        %v789 = vadd.f32 %v609, %v788
        %v790 = vpop.f32.mrb[0].mxu0
        %v791 = vadd.f32 %v605, %v790
        %v792 = vpop.f32.mrb[0].mxu0
        %v793 = vadd.f32 %v609, %v792
        %794 = vmatprep.mubr.bf16.mxu0 0
        %795 = vmatmul.mubr.bf16.gmra.mrb[0].mxu0 %v583
        %v796 = vpop.f32.mrb[0].mxu0
        %v797 = vadd.f32 %v605, %v796
        %v798 = vpop.f32.mrb[0].mxu0
        %v799 = vadd.f32 %v609, %v798
        %v800 = vpop.f32.mrb[0].mxu0
        %v801 = vadd.f32 %v605, %v800
        %v802 = vpop.f32.mrb[0].mxu0
        %v803 = vadd.f32 %v609, %v802
        %804 = vdwg.mxu0
        %v805 = vmax.f32 %v727, 0.0
        %v806 = vmax.f32 %v729, 0.0
        %v807 = vmax.f32 %v731, 0.0
        %v808 = vmax.f32 %v733, 0.0
        %v809 = vmax.f32 %v737, 0.0
        %v810 = vmax.f32 %v739, 0.0
        %v811 = vmax.f32 %v741, 0.0
        %v812 = vmax.f32 %v743, 0.0
        %v813 = vmax.f32 %v747, 0.0
        %v814 = vmax.f32 %v749, 0.0
        %v815 = vmax.f32 %v751, 0.0
        %v816 = vmax.f32 %v753, 0.0
        %v817 = vmax.f32 %v757, 0.0
        %v818 = vmax.f32 %v759, 0.0
        %v819 = vmax.f32 %v761, 0.0
        %v820 = vmax.f32 %v763, 0.0
        %v821 = vmax.f32 %v767, 0.0
        %v822 = vmax.f32 %v769, 0.0
        %v823 = vmax.f32 %v771, 0.0
        %v824 = vmax.f32 %v773, 0.0
        %v825 = vmax.f32 %v777, 0.0
        %v826 = vmax.f32 %v779, 0.0
        %v827 = vmax.f32 %v781, 0.0
        %v828 = vmax.f32 %v783, 0.0
        %v829 = vmax.f32 %v787, 0.0
        %v830 = vmax.f32 %v789, 0.0
        %v831 = vmax.f32 %v791, 0.0
        %v832 = vmax.f32 %v793, 0.0
        %v833 = vmax.f32 %v797, 0.0
        %v834 = vmax.f32 %v799, 0.0
        %v835 = vmax.f32 %v801, 0.0
        %v836 = vmax.f32 %v803, 0.0
        %v837 = vpack.c.bf16 %v807, %v805
        %v838 = vpack.c.bf16 %v808, %v806
        %v839 = vpack.c.bf16 %v811, %v809
        %v840 = vpack.c.bf16 %v812, %v810
        %v841 = vpack.c.bf16 %v815, %v813
        %v842 = vpack.c.bf16 %v816, %v814
        %v843 = vpack.c.bf16 %v819, %v817
        %v844 = vpack.c.bf16 %v820, %v818
        %v845 = vpack.c.bf16 %v823, %v821
        %v846 = vpack.c.bf16 %v824, %v822
        %v847 = vpack.c.bf16 %v827, %v825
        %v848 = vpack.c.bf16 %v828, %v826
        %v849 = vpack.c.bf16 %v831, %v829
        %v850 = vpack.c.bf16 %v832, %v830
        %v851 = vpack.c.bf16 %v835, %v833
        %v852 = vpack.c.bf16 %v836, %v834
        %v869 = vunpack.c.l.b16 %v837
        %v870 = vunpack.c.l.b16 %v838
        %v871 = vunpack.c.h.b16 %v837
        %v872 = vunpack.c.h.b16 %v838
        %v873 = vunpack.c.l.b16 %v839
        %v874 = vunpack.c.l.b16 %v840
        %v875 = vunpack.c.h.b16 %v839
        %v876 = vunpack.c.h.b16 %v840
        %v877 = vunpack.c.l.b16 %v841
        %v878 = vunpack.c.l.b16 %v842
        %v879 = vunpack.c.h.b16 %v841
        %v880 = vunpack.c.h.b16 %v842
        %v881 = vunpack.c.l.b16 %v843
        %v882 = vunpack.c.l.b16 %v844
        %v883 = vunpack.c.h.b16 %v843
        %v884 = vunpack.c.h.b16 %v844
        %v885 = vunpack.c.l.b16 %v845
        %v886 = vunpack.c.l.b16 %v846
        %v887 = vunpack.c.h.b16 %v845
        %v888 = vunpack.c.h.b16 %v846
        %v889 = vunpack.c.l.b16 %v847
        %v890 = vunpack.c.l.b16 %v848
        %v891 = vunpack.c.h.b16 %v847
        %v892 = vunpack.c.h.b16 %v848
        %v893 = vunpack.c.l.b16 %v849
        %v894 = vunpack.c.l.b16 %v850
        %v895 = vunpack.c.h.b16 %v849
        %v896 = vunpack.c.h.b16 %v850
        %v897 = vunpack.c.l.b16 %v851
        %v898 = vunpack.c.l.b16 %v852
        %v899 = vunpack.c.h.b16 %v851
        %v900 = vunpack.c.h.b16 %v852
        %v901 = vpack.c.b16 %v870, %v869
        %v902 = vpack.c.b16 %v872, %v871
        %v903 = vpack.c.b16 %v874, %v873
        %v904 = vpack.c.b16 %v876, %v875
        %v905 = vpack.c.b16 %v878, %v877
        %v906 = vpack.c.b16 %v880, %v879
        %v907 = vpack.c.b16 %v882, %v881
        %v908 = vpack.c.b16 %v884, %v883
        %v909 = vpack.c.b16 %v886, %v885
        %v910 = vpack.c.b16 %v888, %v887
        %v911 = vpack.c.b16 %v890, %v889
        %v912 = vpack.c.b16 %v892, %v891
        %v913 = vpack.c.b16 %v894, %v893
        %v914 = vpack.c.b16 %v896, %v895
        %v915 = vpack.c.b16 %v898, %v897
        %v916 = vpack.c.b16 %v900, %v899
        %933 = vst [vmem:[%s232] sm:$0xff] %v901
        %934 = vst [vmem:[%s232 + $0x8] sm:$0xff] %v902
        %935 = vst [vmem:[%s232 + $0x10] sm:$0xff] %v903
        %936 = vst [vmem:[%s232 + $0x18] sm:$0xff] %v904
        %937 = vst [vmem:[%s232 + $0x20] sm:$0xff] %v905
        %938 = vst [vmem:[%s232 + $0x28] sm:$0xff] %v906
        %939 = vst [vmem:[%s232 + $0x30] sm:$0xff] %v907
        %940 = vst [vmem:[%s232 + $0x38] sm:$0xff] %v908
        %941 = vst [vmem:[%s232 + $0x40] sm:$0xff] %v909
        %942 = vst [vmem:[%s232 + $0x48] sm:$0xff] %v910
        %943 = vst [vmem:[%s232 + $0x50] sm:$0xff] %v911
        %944 = vst [vmem:[%s232 + $0x58] sm:$0xff] %v912
        %945 = vst [vmem:[%s232 + $0x60] sm:$0xff] %v913
        %946 = vst [vmem:[%s232 + $0x68] sm:$0xff] %v914
        %947 = vst [vmem:[%s232 + $0x70] sm:$0xff] %v915
        %948 = vst [vmem:[%s232 + $0x78] sm:$0xff] %v916
      $region44: #{gcn_forward.3} parent=35 // pred_fallthru
        _
      %s949 = smul.u32 16, %s19
      %p950 = scmp.lt.s32.totalorder %s949, 31
      %s951 = scalar_select %p950, %s949, 31
      %s952 = smul.addr %s951, 2
      %s953 = smul.addr %s952, 4
      %s954 = scalar_lea.vmem %s4, %s953
      // Predicated region
      $region45: #{gcn_forward.3} parent=35 // pred_check
        %p955 = pneg %p136
      $region46: #{gcn_forward.3} parent=35 // pred_check_branch
        %957 = sbr.rel (%p955) target = $region48
      $region47: #{gcn_forward.3} parent=35 // pred_region
        %s958 = smul.u32 16, %s19
      $region48: #{gcn_forward.3} parent=35 // pred_fallthru
        _
    $region36: #{gcn_forward.3} parent=5 // pred_fallthru
      _
    %p959 = scmp.le.s32.totalorder 2, %s10
    // Predicated region
    $region49: #{gcn_forward.3} parent=5 // pred_check
      %p960 = pneg %p959
    $region50: #{gcn_forward.3} parent=5 // pred_check_branch
      %962 = sbr.rel (%p960) target = $region52
    $region51: #{gcn_forward.3} parent=5 // pred_region
      %s963 = ssub.s32 %s10, 2
      // Predicated region
      $region53: #{gcn_forward.3} parent=51 // pred_check
        %p964 = pneg %p142
      $region54: #{gcn_forward.3} parent=51 // pred_check_branch
        %966 = sbr.rel (%p964) target = $region56
      $region55: #{gcn_forward.3} parent=51 // pred_region
        %s967 = smul.u32 16, %s21
        %p968 = scmp.lt.s32.totalorder %s967, 31
        %s969 = scalar_select %p968, %s967, 31
        %s970 = smul.addr %s969, 2
        %s971 = smul.addr %s970, 4
        %s972 = scalar_lea.vmem %s4, %s971
      $region56: #{gcn_forward.3} parent=51 // pred_fallthru
        _
    $region52: #{gcn_forward.3} parent=5 // pred_fallthru
      _
  $region6: #{gcn_forward.3} parent=0 // loop_footer
    %s14 = sadd.s32 1, %s10
  $region7: #{gcn_forward.3} parent=0 // loop_footer_branch
    %9 = sbr.rel target = $region3
  $region8: #{gcn_forward.3} parent=0 // loop_exit
    _

// kernel: gcn_forward.5
$region0: #{gcn_forward.5}
  #allocation0 [shape = 'u32[]', space=smem, size = 0x4, offset = 0x4, fixed_abs, tag = 'smem constant byte address 0x4 - core index']
  #allocation1 [shape = 'u32[144,128]{1,0:T(1,128)}', space=vmem, size = 0x12000, scoped, tag = 'internal scratch']
  #allocation2 [shape = 'f32[128,128]{1,0:T(8,128)}', space=vmem, size = 0x10000, scoped, tag = 'scratch operand']
  %s0 = inlined_call_operand.vmem [shape: s8[256,256], index: 0, kind: input, shape index: {}]
  %s1 = inlined_call_operand.vmem [shape: bf16[256,128], index: 1, kind: input, shape index: {}]
  %s2 = inlined_call_operand.vmem [shape: f32[1,128], index: 2, kind: input, shape index: {}]
  %s3 = inlined_call_operand.vmem [shape: bf16[256,128], index: 3, kind: output, shape index: {}]
  %s4 = sld [smem:[#allocation0]]
  $region53: #{gcn_forward.5} parent=0
    _
  %s6 = ssub.s32 1, %s4
  %s7 = scalar_select 0, %s6, %s4
  loop: start=0, step=1, limit=4
  $region2: #{gcn_forward.5} parent=0 // loop_pre_header
    _
  $region3: #{gcn_forward.5} parent=0 // loop_header
    %s9 = sphi 0, %s13
    %p10 = scmp.ge.s32.totalorder %s9, 4
    %s16 = sphi 0, %s28
    %s17 = sphi 0, %s24
    %s18 = sphi 0, %s16
    %s19 = sphi 0, %s17
    %s20 = sphi 0, %s18
    %s21 = sphi 0, %s19
    %s33 = sphi 0, %s35
    %s36 = sphi 0, %s33
    %s37 = sphi 0, %s36
    %s53 = sphi 0, %s37
    %s57 = sphi 0, %s57
    %s59 = sphi 0, %s57
    %s60 = sphi 0, %s59
    %s74 = sphi 0, %s60
    %s78 = sphi 0, %s78
    %s80 = sphi 0, %s78
    %s81 = sphi 0, %s80
    %s95 = sphi 0, %s81
    %s101 = sphi 0, %s103
    %s104 = sphi 0, %s101
    %s105 = sphi 0, %s104
    %s121 = sphi 0, %s105
  $region4: #{gcn_forward.5} parent=0 // loop_header_branch
    %12 = sbr.rel (%p10) target = $region8
  $region5: #{gcn_forward.5} parent=0 // loop_body
    %s14 = ssub.s32 %s9, 1
    %s15 = ssub.s32 %s9, 2
    %s22 = sadd.s32 1, %s17
    %p23 = scmp.ge.s32.totalorder %s22, 1
    %s24 = scalar_select %p23, 0, %s22
    %s25 = sadd.s32 1, %s16
    %s26 = scalar_select %p23, %s25, %s16
    %p27 = scmp.ge.s32.totalorder %s26, 2
    %s28 = scalar_select %p27, 0, %s26
    %s29 = ssub.s32 %s16, %s28
    %s30 = ssub.s32 %s17, %s24
    %s31 = sor.u32 %s29, %s30
    %p32 = scmp.eq.s32.totalorder %s31, 0
    %s34 = sadd.s32 %s33, 1
    %s35 = scalar_select %p32, %s33, %s34
    %p38 = pneg %p32
    %p39 = scmp.eq.s32.totalorder %s9, 1
    %p40 = por %p38, %p39
    %p41 = scmp.ne.s32.totalorder %s33, %s36
    %p42 = scmp.eq.s32.totalorder %s9, 0
    %p43 = por %p41, %p42
    %p44 = scmp.ne.s32.totalorder %s33, %s36
    %p45 = scmp.eq.s32.totalorder %s14, 1
    %p46 = por %p44, %p45
    %p47 = scmp.ne.s32.totalorder %s36, %s37
    %p48 = scmp.eq.s32.totalorder %s14, 0
    %p49 = por %p47, %p48
    %p50 = scmp.ne.s32.totalorder %s36, %s37
    %p51 = scmp.eq.s32.totalorder %s15, 1
    %p52 = por %p50, %p51
    %p54 = scmp.ne.s32.totalorder %s37, %s53
    %p55 = scmp.eq.s32.totalorder %s15, 0
    %p56 = por %p54, %p55
    %s58 = sadd.s32 %s57, 1
    %p61 = scmp.eq.s32.totalorder %s9, 1
    %p62 = scmp.ne.s32.totalorder %s57, %s59
    %p63 = scmp.eq.s32.totalorder %s9, 0
    %p64 = por %p62, %p63
    %p65 = scmp.ne.s32.totalorder %s57, %s59
    %p66 = scmp.eq.s32.totalorder %s14, 1
    %p67 = por %p65, %p66
    %p68 = scmp.ne.s32.totalorder %s59, %s60
    %p69 = scmp.eq.s32.totalorder %s14, 0
    %p70 = por %p68, %p69
    %p71 = scmp.ne.s32.totalorder %s59, %s60
    %p72 = scmp.eq.s32.totalorder %s15, 1
    %p73 = por %p71, %p72
    %p75 = scmp.ne.s32.totalorder %s60, %s74
    %p76 = scmp.eq.s32.totalorder %s15, 0
    %p77 = por %p75, %p76
    %s79 = sadd.s32 %s78, 1
    %p82 = scmp.eq.s32.totalorder %s9, 1
    %p83 = scmp.ne.s32.totalorder %s78, %s80
    %p84 = scmp.eq.s32.totalorder %s9, 0
    %p85 = por %p83, %p84
    %p86 = scmp.ne.s32.totalorder %s78, %s80
    %p87 = scmp.eq.s32.totalorder %s14, 1
    %p88 = por %p86, %p87
    %p89 = scmp.ne.s32.totalorder %s80, %s81
    %p90 = scmp.eq.s32.totalorder %s14, 0
    %p91 = por %p89, %p90
    %p92 = scmp.ne.s32.totalorder %s80, %s81
    %p93 = scmp.eq.s32.totalorder %s15, 1
    %p94 = por %p92, %p93
    %p96 = scmp.ne.s32.totalorder %s81, %s95
    %p97 = scmp.eq.s32.totalorder %s15, 0
    %p98 = por %p96, %p97
    %s99 = ssub.s32 %s16, %s28
    %p100 = scmp.eq.s32.totalorder %s99, 0
    %s102 = sadd.s32 %s101, 1
    %s103 = scalar_select %p100, %s101, %s102
    %p106 = pneg %p100
    %p107 = scmp.eq.s32.totalorder %s9, 1
    %p108 = por %p106, %p107
    %p109 = scmp.ne.s32.totalorder %s101, %s104
    %p110 = scmp.eq.s32.totalorder %s9, 0
    %p111 = por %p109, %p110
    %p112 = scmp.ne.s32.totalorder %s101, %s104
    %p113 = scmp.eq.s32.totalorder %s14, 1
    %p114 = por %p112, %p113
    %p115 = scmp.ne.s32.totalorder %s104, %s105
    %p116 = scmp.eq.s32.totalorder %s14, 0
    %p117 = por %p115, %p116
    %p118 = scmp.ne.s32.totalorder %s104, %s105
    %p119 = scmp.eq.s32.totalorder %s15, 1
    %p120 = por %p118, %p119
    %p122 = scmp.ne.s32.totalorder %s105, %s121
    %p123 = scmp.eq.s32.totalorder %s15, 0
    %p124 = por %p122, %p123
    %p125 = scmp.le.s32.totalorder 1, %s9
    %p126 = scmp.lt.s32.totalorder %s9, 3
    %p127 = pnand %p125, %p126
    %p128 = pneg %p127
    // Predicated region
    $region9: #{gcn_forward.5} parent=5 // pred_check
      _
    $region10: #{gcn_forward.5} parent=5 // pred_check_branch
      %130 = sbr.rel (%p127) target = $region12
    $region11: #{gcn_forward.5} parent=5 // pred_region
      %s131 = ssub.s32 %s9, 1
      // Predicated region
      $region13: #{gcn_forward.5} parent=11 // pred_check
        %p132 = pneg %p70
      $region14: #{gcn_forward.5} parent=11 // pred_check_branch
        %134 = sbr.rel (%p132) target = $region16
      $region15: #{gcn_forward.5} parent=11 // pred_region
        _
      $region16: #{gcn_forward.5} parent=11 // pred_fallthru
        _
      // Predicated region
      $region17: #{gcn_forward.5} parent=11 // pred_check
        %p135 = pneg %p91
      $region18: #{gcn_forward.5} parent=11 // pred_check_branch
        %137 = sbr.rel (%p135) target = $region20
      $region19: #{gcn_forward.5} parent=11 // pred_region
        _
      $region20: #{gcn_forward.5} parent=11 // pred_fallthru
        _
    $region12: #{gcn_forward.5} parent=5 // pred_fallthru
      _
    %p138 = scmp.lt.s32.totalorder %s9, 2
    // Predicated region
    $region21: #{gcn_forward.5} parent=5 // pred_check
      %p139 = pneg %p138
    $region22: #{gcn_forward.5} parent=5 // pred_check_branch
      %141 = sbr.rel (%p139) target = $region24
    $region23: #{gcn_forward.5} parent=5 // pred_region
      // Predicated region
      $region25: #{gcn_forward.5} parent=23 // pred_check
        %p142 = pneg %p43
      $region26: #{gcn_forward.5} parent=23 // pred_check_branch
        %144 = sbr.rel (%p142) target = $region28
      $region27: #{gcn_forward.5} parent=23 // pred_region
        %s145 = smul.u32 4, %s16
        %s146 = smul.u32 2, %s17
        %p147 = scmp.lt.s32.totalorder %s145, 7
        %s148 = scalar_select %p147, %s145, 7
        %p149 = scmp.lt.s32.totalorder %s146, 1
        %s150 = scalar_select %p149, %s146, 1
        %s151 = smul.addr %s148, 2
        %s152 = sadd.s32 %s150, %s151
        %s153 = smul.addr %s152, 8
        %s154 = scalar_lea.vmem %s0, %s153
        %s155 = smul.u32 4, %s16
        %s156 = smul.u32 2, %s17
      $region28: #{gcn_forward.5} parent=23 // pred_fallthru
        _
    $region24: #{gcn_forward.5} parent=5 // pred_fallthru
      _
    %p157 = scmp.le.s32.totalorder 1, %s9
    %p158 = scmp.lt.s32.totalorder %s9, 3
    %p159 = pnand %p157, %p158
    %p160 = pneg %p159
    // Predicated region
    $region29: #{gcn_forward.5} parent=5 // pred_check
      _
    $region30: #{gcn_forward.5} parent=5 // pred_check_branch
      %162 = sbr.rel (%p159) target = $region32
    $region31: #{gcn_forward.5} parent=5 // pred_region
      %s163 = ssub.s32 %s9, 1
      %s164 = smul.u32 4, %s18
      %s165 = smul.u32 2, %s19
      %p166 = scmp.lt.s32.totalorder %s164, 7
      %s167 = scalar_select %p166, %s164, 7
      %p168 = scmp.lt.s32.totalorder %s165, 1
      %s169 = scalar_select %p168, %s165, 1
      %s170 = smul.addr %s167, 2
      %s171 = sadd.s32 %s169, %s170
      %s172 = smul.addr %s171, 8
      %s173 = scalar_lea.vmem %s0, %s172
      %p174 = pneg %p49
      %p175 = pneg %p46
      %p176 = pneg %p70
      %p177 = pneg %p67
      %p178 = pneg %p91
      %p179 = pneg %p88
      %p180 = pneg %p117
      %p181 = pneg %p114
      %s182 = smul.u32 16, %s18
      %p183 = scmp.lt.s32.totalorder %s182, 31
      %s184 = scalar_select %p183, %s182, 31
      %s185 = smul.addr %s184, 4
      %s186 = scalar_lea.vmem %s3, %s185
      %s187 = smul.u32 4, %s18
      %s188 = smul.u32 2, %s19
      %p189 = scmp.lt.s32.totalorder %s187, 7
      %s190 = scalar_select %p189, %s187, 7
      %p191 = scmp.lt.s32.totalorder %s188, 1
      %s192 = scalar_select %p191, %s188, 1
      %s193 = smul.addr %s190, 2
      %s194 = sadd.s32 %s192, %s193
      %s195 = smul.addr %s194, 8
      %s196 = scalar_lea.vmem %s0, %s195
      %s197 = smul.u32 4, %s18
      %s198 = smul.u32 2, %s19
      %s199 = smul.u32 16, %s18
      %p200 = scmp.lt.s32.totalorder %s199, 31
      %s201 = scalar_select %p200, %s199, 31
      %s202 = smul.addr %s201, 4
      %s203 = scalar_lea.vmem %s3, %s202
      %s204 = smul.u32 16, %s18
      %p206 = scmp.eq.s32.totalorder %s19, 0
      // Predicated region
      $region33: #{gcn_forward.5} parent=31 // pred_check
        %p207 = pneg %p206
      $region34: #{gcn_forward.5} parent=31 // pred_check_branch
        %209 = sbr.rel (%p207) target = $region36
      $region35: #{gcn_forward.5} parent=31 // pred_region
        %210 = vst [vmem:[#allocation2] sm:$0xff] 0.0
        %211 = vst [vmem:[#allocation2 + $0x8] sm:$0xff] 0.0
        %212 = vst [vmem:[#allocation2 + $0x10] sm:$0xff] 0.0
        %213 = vst [vmem:[#allocation2 + $0x18] sm:$0xff] 0.0
        %214 = vst [vmem:[#allocation2 + $0x20] sm:$0xff] 0.0
        %215 = vst [vmem:[#allocation2 + $0x28] sm:$0xff] 0.0
        %216 = vst [vmem:[#allocation2 + $0x30] sm:$0xff] 0.0
        %217 = vst [vmem:[#allocation2 + $0x38] sm:$0xff] 0.0
        %218 = vst [vmem:[#allocation2 + $0x40] sm:$0xff] 0.0
        %219 = vst [vmem:[#allocation2 + $0x48] sm:$0xff] 0.0
        %220 = vst [vmem:[#allocation2 + $0x50] sm:$0xff] 0.0
        %221 = vst [vmem:[#allocation2 + $0x58] sm:$0xff] 0.0
        %222 = vst [vmem:[#allocation2 + $0x60] sm:$0xff] 0.0
        %223 = vst [vmem:[#allocation2 + $0x68] sm:$0xff] 0.0
        %224 = vst [vmem:[#allocation2 + $0x70] sm:$0xff] 0.0
        %225 = vst [vmem:[#allocation2 + $0x78] sm:$0xff] 0.0
      $region36: #{gcn_forward.5} parent=31 // pred_fallthru
        _
      %s226 = smul.u32 %s19, 256
      %s227 = sshra.s32 %s226, 3
      %s228 = sand.u32 %s226, 7
      %s229 = smul.addr %s227, 4
      %s230 = scalar_lea.vmem %s1, %s229
      %v231 = vld [vmem:[%s230] sm:$0xf]
      %v232 = vld [vmem:[%s230 + $0x4] sm:$0xf]
      %v233 = vld [vmem:[%s230 + $0x8] sm:$0xf]
      %v234 = vld [vmem:[%s230 + $0xc] sm:$0xf]
      %v235 = vld [vmem:[%s230 + $0x10] sm:$0xf]
      %v236 = vld [vmem:[%s230 + $0x14] sm:$0xf]
      %v237 = vld [vmem:[%s230 + $0x18] sm:$0xf]
      %v238 = vld [vmem:[%s230 + $0x1c] sm:$0xf]
      %v239 = vld [vmem:[%s230 + $0x20] sm:$0xf]
      %v240 = vld [vmem:[%s230 + $0x24] sm:$0xf]
      %v241 = vld [vmem:[%s230 + $0x28] sm:$0xf]
      %v242 = vld [vmem:[%s230 + $0x2c] sm:$0xf]
      %v243 = vld [vmem:[%s230 + $0x30] sm:$0xf]
      %v244 = vld [vmem:[%s230 + $0x34] sm:$0xf]
      %v245 = vld [vmem:[%s230 + $0x38] sm:$0xf]
      %v246 = vld [vmem:[%s230 + $0x3c] sm:$0xf]
      %v247 = vld [vmem:[%s230 + $0x40] sm:$0xf]
      %v248 = vld [vmem:[%s230 + $0x44] sm:$0xf]
      %v249 = vld [vmem:[%s230 + $0x48] sm:$0xf]
      %v250 = vld [vmem:[%s230 + $0x4c] sm:$0xf]
      %v251 = vld [vmem:[%s230 + $0x50] sm:$0xf]
      %v252 = vld [vmem:[%s230 + $0x54] sm:$0xf]
      %v253 = vld [vmem:[%s230 + $0x58] sm:$0xf]
      %v254 = vld [vmem:[%s230 + $0x5c] sm:$0xf]
      %v255 = vld [vmem:[%s230 + $0x60] sm:$0xf]
      %v256 = vld [vmem:[%s230 + $0x64] sm:$0xf]
      %v257 = vld [vmem:[%s230 + $0x68] sm:$0xf]
      %v258 = vld [vmem:[%s230 + $0x6c] sm:$0xf]
      %v259 = vld [vmem:[%s230 + $0x70] sm:$0xf]
      %v260 = vld [vmem:[%s230 + $0x74] sm:$0xf]
      %v261 = vld [vmem:[%s230 + $0x78] sm:$0xf]
      %v262 = vld [vmem:[%s230 + $0x7c] sm:$0xf]
      %v263 = vld [vmem:[%s196] sm:$0xff]
      %v264 = vld [vmem:[%s196 + $0x8] sm:$0xff]
      %v265 = vld [vmem:[%s196 + $0x10] sm:$0xff]
      %v266 = vld [vmem:[%s196 + $0x18] sm:$0xff]
      %v267 = vld [vmem:[%s196 + $0x20] sm:$0xff]
      %v268 = vld [vmem:[%s196 + $0x28] sm:$0xff]
      %v269 = vld [vmem:[%s196 + $0x30] sm:$0xff]
      %v270 = vld [vmem:[%s196 + $0x38] sm:$0xff]
      %v271 = vunpack.c.l.s8.bf16 %v263
      %v272 = vunpack.c.l.s8.bf16 %v264
      %v273 = vunpack.c.h.s8.bf16 %v263
      %v274 = vunpack.c.h.s8.bf16 %v264
      %v275 = vunpack.c.l.s8.bf16 %v265
      %v276 = vunpack.c.l.s8.bf16 %v266
      %v277 = vunpack.c.h.s8.bf16 %v265
      %v278 = vunpack.c.h.s8.bf16 %v266
      %v279 = vunpack.c.l.s8.bf16 %v267
      %v280 = vunpack.c.l.s8.bf16 %v268
      %v281 = vunpack.c.h.s8.bf16 %v267
      %v282 = vunpack.c.h.s8.bf16 %v268
      %v283 = vunpack.c.l.s8.bf16 %v269
      %v284 = vunpack.c.l.s8.bf16 %v270
      %v285 = vunpack.c.h.s8.bf16 %v269
      %v286 = vunpack.c.h.s8.bf16 %v270
      %v287 = vld [vmem:[#allocation2] sm:$0xff]
      %v288 = vld [vmem:[#allocation2 + $0x8] sm:$0xff]
      %v289 = vld [vmem:[#allocation2 + $0x10] sm:$0xff]
      %v290 = vld [vmem:[#allocation2 + $0x18] sm:$0xff]
      %v291 = vld [vmem:[#allocation2 + $0x20] sm:$0xff]
      %v292 = vld [vmem:[#allocation2 + $0x28] sm:$0xff]
      %v293 = vld [vmem:[#allocation2 + $0x30] sm:$0xff]
      %v294 = vld [vmem:[#allocation2 + $0x38] sm:$0xff]
      %v295 = vld [vmem:[#allocation2 + $0x40] sm:$0xff]
      %v296 = vld [vmem:[#allocation2 + $0x48] sm:$0xff]
      %v297 = vld [vmem:[#allocation2 + $0x50] sm:$0xff]
      %v298 = vld [vmem:[#allocation2 + $0x58] sm:$0xff]
      %v299 = vld [vmem:[#allocation2 + $0x60] sm:$0xff]
      %v300 = vld [vmem:[#allocation2 + $0x68] sm:$0xff]
      %v301 = vld [vmem:[#allocation2 + $0x70] sm:$0xff]
      %v302 = vld [vmem:[#allocation2 + $0x78] sm:$0xff]
      %v335 = vunpack.c.l.b16 %v231
      %v336 = vunpack.c.l.b16 %v232
      %v337 = vunpack.c.l.b16 %v233
      %v338 = vunpack.c.l.b16 %v234
      %v339 = vunpack.c.l.b16 %v235
      %v340 = vunpack.c.l.b16 %v236
      %v341 = vunpack.c.l.b16 %v237
      %v342 = vunpack.c.l.b16 %v238
      %v343 = vunpack.c.l.b16 %v239
      %v344 = vunpack.c.l.b16 %v240
      %v345 = vunpack.c.l.b16 %v241
      %v346 = vunpack.c.l.b16 %v242
      %v347 = vunpack.c.l.b16 %v243
      %v348 = vunpack.c.l.b16 %v244
      %v349 = vunpack.c.l.b16 %v245
      %v350 = vunpack.c.l.b16 %v246
      %v351 = vunpack.c.l.b16 %v247
      %v352 = vunpack.c.l.b16 %v248
      %v353 = vunpack.c.l.b16 %v249
      %v354 = vunpack.c.l.b16 %v250
      %v355 = vunpack.c.l.b16 %v251
      %v356 = vunpack.c.l.b16 %v252
      %v357 = vunpack.c.l.b16 %v253
      %v358 = vunpack.c.l.b16 %v254
      %v359 = vunpack.c.l.b16 %v255
      %v360 = vunpack.c.l.b16 %v256
      %v361 = vunpack.c.l.b16 %v257
      %v362 = vunpack.c.l.b16 %v258
      %v363 = vunpack.c.l.b16 %v259
      %v364 = vunpack.c.l.b16 %v260
      %v365 = vunpack.c.l.b16 %v261
      %v366 = vunpack.c.l.b16 %v262
      %v367 = vpack.c.b16 %v336, %v335
      %v368 = vpack.c.b16 %v338, %v337
      %v369 = vpack.c.b16 %v340, %v339
      %v370 = vpack.c.b16 %v342, %v341
      %v371 = vpack.c.b16 %v344, %v343
      %v372 = vpack.c.b16 %v346, %v345
      %v373 = vpack.c.b16 %v348, %v347
      %v374 = vpack.c.b16 %v350, %v349
      %v375 = vpack.c.b16 %v352, %v351
      %v376 = vpack.c.b16 %v354, %v353
      %v377 = vpack.c.b16 %v356, %v355
      %v378 = vpack.c.b16 %v358, %v357
      %v379 = vpack.c.b16 %v360, %v359
      %v380 = vpack.c.b16 %v362, %v361
      %v381 = vpack.c.b16 %v364, %v363
      %v382 = vpack.c.b16 %v366, %v365
      %399 = vmatprep.subr.bf16.mxu0 0
      %400 = vmatpush1.bf16.msra.mxu0 %v367
      %401 = vmatprep.subr.bf16.mxu0 0
      %402 = vmatpush1.bf16.msra.mxu0 %v368
      %403 = vmatprep.subr.bf16.mxu0 0
      %404 = vmatpush1.bf16.msra.mxu0 %v369
      %405 = vmatprep.subr.bf16.mxu0 0
      %406 = vmatpush1.bf16.msra.mxu0 %v370
      %407 = vmatprep.subr.bf16.mxu0 0
      %408 = vmatpush1.bf16.msra.mxu0 %v371
      %409 = vmatprep.subr.bf16.mxu0 0
      %410 = vmatpush1.bf16.msra.mxu0 %v372
      %411 = vmatprep.subr.bf16.mxu0 0
      %412 = vmatpush1.bf16.msra.mxu0 %v373
      %413 = vmatprep.subr.bf16.mxu0 0
      %414 = vmatpush1.bf16.msra.mxu0 %v374
      %415 = vmatprep.subr.bf16.mxu0 0
      %416 = vmatpush1.bf16.msra.mxu0 %v375
      %417 = vmatprep.subr.bf16.mxu0 0
      %418 = vmatpush1.bf16.msra.mxu0 %v376
      %419 = vmatprep.subr.bf16.mxu0 0
      %420 = vmatpush1.bf16.msra.mxu0 %v377
      %421 = vmatprep.subr.bf16.mxu0 0
      %422 = vmatpush1.bf16.msra.mxu0 %v378
      %423 = vmatprep.subr.bf16.mxu0 0
      %424 = vmatpush1.bf16.msra.mxu0 %v379
      %425 = vmatprep.subr.bf16.mxu0 0
      %426 = vmatpush1.bf16.msra.mxu0 %v380
      %427 = vmatprep.subr.bf16.mxu0 0
      %428 = vmatpush1.bf16.msra.mxu0 %v381
      %429 = vmatprep.subr.bf16.mxu0 0
      %430 = vmatpush1.bf16.msra.mxu0 %v382
      %431 = vmatprep.mubr.bf16.mxu0 %v272
      %432 = vmatmul.mubr.bf16.gmra.mrb[0].mxu0 %v271
      %v433 = vpop.f32.mrb[0].mxu0
      %v434 = vadd.f32 0.0, %v433
      %v435 = vpop.f32.mrb[0].mxu0
      %v436 = vpop.f32.mrb[0].mxu0
      %v437 = vadd.f32 0.0, %v436
      %v438 = vpop.f32.mrb[0].mxu0
      %439 = vmatprep.mubr.bf16.mxu0 %v274
      %440 = vmatmul.mubr.bf16.gmra.mrb[0].mxu0 %v273
      %v441 = vpop.f32.mrb[0].mxu0
      %v442 = vadd.f32 0.0, %v441
      %v443 = vpop.f32.mrb[0].mxu0
      %v444 = vpop.f32.mrb[0].mxu0
      %v445 = vadd.f32 0.0, %v444
      %v446 = vpop.f32.mrb[0].mxu0
      %447 = vmatprep.mubr.bf16.mxu0 %v276
      %448 = vmatmul.mubr.bf16.gmra.mrb[0].mxu0 %v275
      %v449 = vpop.f32.mrb[0].mxu0
      %v450 = vadd.f32 0.0, %v449
      %v451 = vpop.f32.mrb[0].mxu0
      %v452 = vpop.f32.mrb[0].mxu0
      %v453 = vadd.f32 0.0, %v452
      %v454 = vpop.f32.mrb[0].mxu0
      %455 = vmatprep.mubr.bf16.mxu0 %v278
      %456 = vmatmul.mubr.bf16.gmra.mrb[0].mxu0 %v277
      %v457 = vpop.f32.mrb[0].mxu0
      %v458 = vadd.f32 0.0, %v457
      %v459 = vpop.f32.mrb[0].mxu0
      %v460 = vpop.f32.mrb[0].mxu0
      %v461 = vadd.f32 0.0, %v460
      %v462 = vpop.f32.mrb[0].mxu0
      %463 = vmatprep.mubr.bf16.mxu0 %v280
      %464 = vmatmul.mubr.bf16.gmra.mrb[0].mxu0 %v279
      %v465 = vpop.f32.mrb[0].mxu0
      %v466 = vadd.f32 0.0, %v465
      %v467 = vpop.f32.mrb[0].mxu0
      %v468 = vpop.f32.mrb[0].mxu0
      %v469 = vadd.f32 0.0, %v468
      %v470 = vpop.f32.mrb[0].mxu0
      %471 = vmatprep.mubr.bf16.mxu0 %v282
      %472 = vmatmul.mubr.bf16.gmra.mrb[0].mxu0 %v281
      %v473 = vpop.f32.mrb[0].mxu0
      %v474 = vadd.f32 0.0, %v473
      %v475 = vpop.f32.mrb[0].mxu0
      %v476 = vpop.f32.mrb[0].mxu0
      %v477 = vadd.f32 0.0, %v476
      %v478 = vpop.f32.mrb[0].mxu0
      %479 = vmatprep.mubr.bf16.mxu0 %v284
      %480 = vmatmul.mubr.bf16.gmra.mrb[0].mxu0 %v283
      %v481 = vpop.f32.mrb[0].mxu0
      %v482 = vadd.f32 0.0, %v481
      %v483 = vpop.f32.mrb[0].mxu0
      %v484 = vpop.f32.mrb[0].mxu0
      %v485 = vadd.f32 0.0, %v484
      %v486 = vpop.f32.mrb[0].mxu0
      %487 = vmatprep.mubr.bf16.mxu0 %v286
      %488 = vmatmul.mubr.bf16.gmra.mrb[0].mxu0 %v285
      %v489 = vpop.f32.mrb[0].mxu0
      %v490 = vadd.f32 0.0, %v489
      %v491 = vpop.f32.mrb[0].mxu0
      %v492 = vpop.f32.mrb[0].mxu0
      %v493 = vadd.f32 0.0, %v492
      %v494 = vpop.f32.mrb[0].mxu0
      %495 = vdwg.mxu0
      %v496 = vadd.f32 %v287, %v434
      %v497 = vadd.f32 %v288, %v437
      %v498 = vadd.f32 %v289, %v442
      %v499 = vadd.f32 %v290, %v445
      %v500 = vadd.f32 %v291, %v450
      %v501 = vadd.f32 %v292, %v453
      %v502 = vadd.f32 %v293, %v458
      %v503 = vadd.f32 %v294, %v461
      %v504 = vadd.f32 %v295, %v466
      %v505 = vadd.f32 %v296, %v469
      %v506 = vadd.f32 %v297, %v474
      %v507 = vadd.f32 %v298, %v477
      %v508 = vadd.f32 %v299, %v482
      %v509 = vadd.f32 %v300, %v485
      %v510 = vadd.f32 %v301, %v490
      %v511 = vadd.f32 %v302, %v493
      %512 = vst [vmem:[#allocation2] sm:$0xff] %v496
      %513 = vst [vmem:[#allocation2 + $0x8] sm:$0xff] %v497
      %514 = vst [vmem:[#allocation2 + $0x10] sm:$0xff] %v498
      %515 = vst [vmem:[#allocation2 + $0x18] sm:$0xff] %v499
      %516 = vst [vmem:[#allocation2 + $0x20] sm:$0xff] %v500
      %517 = vst [vmem:[#allocation2 + $0x28] sm:$0xff] %v501
      %518 = vst [vmem:[#allocation2 + $0x30] sm:$0xff] %v502
      %519 = vst [vmem:[#allocation2 + $0x38] sm:$0xff] %v503
      %520 = vst [vmem:[#allocation2 + $0x40] sm:$0xff] %v504
      %521 = vst [vmem:[#allocation2 + $0x48] sm:$0xff] %v505
      %522 = vst [vmem:[#allocation2 + $0x50] sm:$0xff] %v506
      %523 = vst [vmem:[#allocation2 + $0x58] sm:$0xff] %v507
      %524 = vst [vmem:[#allocation2 + $0x60] sm:$0xff] %v508
      %525 = vst [vmem:[#allocation2 + $0x68] sm:$0xff] %v509
      %526 = vst [vmem:[#allocation2 + $0x70] sm:$0xff] %v510
      %527 = vst [vmem:[#allocation2 + $0x78] sm:$0xff] %v511
      // Predicated region
      $region37: #{gcn_forward.5} parent=31 // pred_check
        %p528 = pneg %p206
      $region38: #{gcn_forward.5} parent=31 // pred_check_branch
        %530 = sbr.rel (%p528) target = $region40
      $region39: #{gcn_forward.5} parent=31 // pred_region
        %v531 = vld [vmem:[#allocation2] sm:$0xff]
        %v532 = vld [vmem:[#allocation2 + $0x8] sm:$0xff]
        %v533 = vld [vmem:[#allocation2 + $0x10] sm:$0xff]
        %v534 = vld [vmem:[#allocation2 + $0x18] sm:$0xff]
        %v535 = vld [vmem:[#allocation2 + $0x20] sm:$0xff]
        %v536 = vld [vmem:[#allocation2 + $0x28] sm:$0xff]
        %v537 = vld [vmem:[#allocation2 + $0x30] sm:$0xff]
        %v538 = vld [vmem:[#allocation2 + $0x38] sm:$0xff]
        %v539 = vld [vmem:[#allocation2 + $0x40] sm:$0xff]
        %v540 = vld [vmem:[#allocation2 + $0x48] sm:$0xff]
        %v541 = vld [vmem:[#allocation2 + $0x50] sm:$0xff]
        %v542 = vld [vmem:[#allocation2 + $0x58] sm:$0xff]
        %v543 = vld [vmem:[#allocation2 + $0x60] sm:$0xff]
        %v544 = vld [vmem:[#allocation2 + $0x68] sm:$0xff]
        %v545 = vld [vmem:[#allocation2 + $0x70] sm:$0xff]
        %v546 = vld [vmem:[#allocation2 + $0x78] sm:$0xff]
        %v547 = vld [vmem:[%s2] sm:$0x1]
        %v549 = vlaneseq
        %v550 = vshrl.u32 %v549, 7
        %v551 = vsub.s32 0, %v550
        %v552 = vrot.slane %v547, %v551
        %v554 = vadd.f32 %v531, %v552
        %v555 = vadd.f32 %v532, %v552
        %v556 = vadd.f32 %v533, %v552
        %v557 = vadd.f32 %v534, %v552
        %v558 = vadd.f32 %v535, %v552
        %v559 = vadd.f32 %v536, %v552
        %v560 = vadd.f32 %v537, %v552
        %v561 = vadd.f32 %v538, %v552
        %v562 = vadd.f32 %v539, %v552
        %v563 = vadd.f32 %v540, %v552
        %v564 = vadd.f32 %v541, %v552
        %v565 = vadd.f32 %v542, %v552
        %v566 = vadd.f32 %v543, %v552
        %v567 = vadd.f32 %v544, %v552
        %v568 = vadd.f32 %v545, %v552
        %v569 = vadd.f32 %v546, %v552
        %v570 = vpack.c.bf16 %v555, %v554
        %v571 = vpack.c.bf16 %v557, %v556
        %v572 = vpack.c.bf16 %v559, %v558
        %v573 = vpack.c.bf16 %v561, %v560
        %v574 = vpack.c.bf16 %v563, %v562
        %v575 = vpack.c.bf16 %v565, %v564
        %v576 = vpack.c.bf16 %v567, %v566
        %v577 = vpack.c.bf16 %v569, %v568
        %v586 = vunpack.c.l.b16 %v570
        %v587 = vunpack.c.h.b16 %v570
        %v588 = vunpack.c.l.b16 %v571
        %v589 = vunpack.c.h.b16 %v571
        %v590 = vunpack.c.l.b16 %v572
        %v591 = vunpack.c.h.b16 %v572
        %v592 = vunpack.c.l.b16 %v573
        %v593 = vunpack.c.h.b16 %v573
        %v594 = vunpack.c.l.b16 %v574
        %v595 = vunpack.c.h.b16 %v574
        %v596 = vunpack.c.l.b16 %v575
        %v597 = vunpack.c.h.b16 %v575
        %v598 = vunpack.c.l.b16 %v576
        %v599 = vunpack.c.h.b16 %v576
        %v600 = vunpack.c.l.b16 %v577
        %v601 = vunpack.c.h.b16 %v577
        %v602 = vpack.c.b16 %v586, %v586
        %v603 = vpack.c.b16 %v587, %v587
        %v604 = vpack.c.b16 %v588, %v588
        %v605 = vpack.c.b16 %v589, %v589
        %v606 = vpack.c.b16 %v590, %v590
        %v607 = vpack.c.b16 %v591, %v591
        %v608 = vpack.c.b16 %v592, %v592
        %v609 = vpack.c.b16 %v593, %v593
        %v610 = vpack.c.b16 %v594, %v594
        %v611 = vpack.c.b16 %v595, %v595
        %v612 = vpack.c.b16 %v596, %v596
        %v613 = vpack.c.b16 %v597, %v597
        %v614 = vpack.c.b16 %v598, %v598
        %v615 = vpack.c.b16 %v599, %v599
        %v616 = vpack.c.b16 %v600, %v600
        %v617 = vpack.c.b16 %v601, %v601
        %634 = vst [vmem:[%s203] sm:$0xf] %v602
        %635 = vst [vmem:[%s203 + $0x4] sm:$0xf] %v603
        %636 = vst [vmem:[%s203 + $0x8] sm:$0xf] %v604
        %637 = vst [vmem:[%s203 + $0xc] sm:$0xf] %v605
        %638 = vst [vmem:[%s203 + $0x10] sm:$0xf] %v606
        %639 = vst [vmem:[%s203 + $0x14] sm:$0xf] %v607
        %640 = vst [vmem:[%s203 + $0x18] sm:$0xf] %v608
        %641 = vst [vmem:[%s203 + $0x1c] sm:$0xf] %v609
        %642 = vst [vmem:[%s203 + $0x20] sm:$0xf] %v610
        %643 = vst [vmem:[%s203 + $0x24] sm:$0xf] %v611
        %644 = vst [vmem:[%s203 + $0x28] sm:$0xf] %v612
        %645 = vst [vmem:[%s203 + $0x2c] sm:$0xf] %v613
        %646 = vst [vmem:[%s203 + $0x30] sm:$0xf] %v614
        %647 = vst [vmem:[%s203 + $0x34] sm:$0xf] %v615
        %648 = vst [vmem:[%s203 + $0x38] sm:$0xf] %v616
        %649 = vst [vmem:[%s203 + $0x3c] sm:$0xf] %v617
      $region40: #{gcn_forward.5} parent=31 // pred_fallthru
        _
      %s650 = smul.u32 16, %s18
      %p651 = scmp.lt.s32.totalorder %s650, 31
      %s652 = scalar_select %p651, %s650, 31
      %s653 = smul.addr %s652, 4
      %s654 = scalar_lea.vmem %s3, %s653
      // Predicated region
      $region41: #{gcn_forward.5} parent=31 // pred_check
        %p655 = pneg %p114
      $region42: #{gcn_forward.5} parent=31 // pred_check_branch
        %657 = sbr.rel (%p655) target = $region44
      $region43: #{gcn_forward.5} parent=31 // pred_region
        %s658 = smul.u32 16, %s18
      $region44: #{gcn_forward.5} parent=31 // pred_fallthru
        _
    $region32: #{gcn_forward.5} parent=5 // pred_fallthru
      _
    %p659 = scmp.le.s32.totalorder 2, %s9
    // Predicated region
    $region45: #{gcn_forward.5} parent=5 // pred_check
      %p660 = pneg %p659
    $region46: #{gcn_forward.5} parent=5 // pred_check_branch
      %662 = sbr.rel (%p660) target = $region48
    $region47: #{gcn_forward.5} parent=5 // pred_region
      %s663 = ssub.s32 %s9, 2
      // Predicated region
      $region49: #{gcn_forward.5} parent=47 // pred_check
        %p664 = pneg %p120
      $region50: #{gcn_forward.5} parent=47 // pred_check_branch
        %666 = sbr.rel (%p664) target = $region52
      $region51: #{gcn_forward.5} parent=47 // pred_region
        %s667 = smul.u32 16, %s20
        %p668 = scmp.lt.s32.totalorder %s667, 31
        %s669 = scalar_select %p668, %s667, 31
        %s670 = smul.addr %s669, 4
        %s671 = scalar_lea.vmem %s3, %s670
      $region52: #{gcn_forward.5} parent=47 // pred_fallthru
        _
    $region48: #{gcn_forward.5} parent=5 // pred_fallthru
      _
  $region6: #{gcn_forward.5} parent=0 // loop_footer
    %s13 = sadd.s32 1, %s9
  $region7: #{gcn_forward.5} parent=0 // loop_footer_branch
    %8 = sbr.rel target = $region3
  $region8: #{gcn_forward.5} parent=0 // loop_exit
    _

</llo_original>
